<compile_context>
chip_gen: v5e
topology: v5e:2x2
jax: 0.10.0
libtpu: 0.0.40
codegen_flags: <defaults>
</compile_context>

<pallas_src>
import functools
import math

import jax
import jax.numpy as jnp
from jax import lax
from jax.experimental import pallas as pl
from jax.experimental.pallas import tpu as pltpu


# --------------------------------------------------------------------------- #
# Pallas kernel: one grid step == Bt batch elements (Bt*W rows).               #
# --------------------------------------------------------------------------- #
def _mha_kernel(x_ref, wqkv_ref, bqkv_ref, wo_ref, bo_ref, o_ref, pv_cat_ref, *,
                num_heads, sub_dim, batch_tile, window_sz, embed_sz):
    E = embed_sz
    rows = batch_tile * window_sz

    # Fused QKV projection: one full-width MXU matmul over the whole row slab.
    # (scale 1/sqrt(sub) already folded into the Q columns / bias in the wrapper)
    qkv = jnp.dot(x_ref[...], wqkv_ref[...],
                  preferred_element_type=jnp.float32) + bqkv_ref[...]      # (rows, 3E)
    qkv_bf = qkv.astype(jnp.bfloat16).reshape(batch_tile, window_sz, 3 * E)

    # Causal mask built in-kernel (zero HBM/VMEM traffic): masked where key > query.
    q_ids = lax.broadcasted_iota(jnp.int32, (batch_tile, window_sz, window_sz), 1)
    k_ids = lax.broadcasted_iota(jnp.int32, (batch_tile, window_sz, window_sz), 2)
    masked = k_ids > q_ids

    for h in range(num_heads):                     # static, fully unrolled
        lo = h * sub_dim
        q = qkv_bf[:, :, lo:lo + sub_dim]                          # (Bt, W, sub)
        k = qkv_bf[:, :, E + lo:E + lo + sub_dim]                  # (Bt, W, sub)
        v = qkv_bf[:, :, 2 * E + lo:2 * E + lo + sub_dim]          # (Bt, W, sub)

        # scores: contract head dim of both operands (no in-kernel transpose)
        s = jnp.einsum('bqd,bkd->bqk', q, k,
                       preferred_element_type=jnp.float32)         # (Bt, W, W)
        s = jnp.where(masked, -jnp.inf, s)

        # nn.Softmax(dim=1) -> softmax over the *query* axis (axis 1 here).
        m = jnp.max(s, axis=1, keepdims=True)                      # (Bt, 1, W)
        e = jnp.exp(s - m)
        denom = jnp.sum(e, axis=1, keepdims=True)                  # (Bt, 1, W)
        p = e * pl.reciprocal(denom, approx=True)

        pv = jnp.einsum('bqk,bkd->bqd', p.astype(jnp.bfloat16), v,
                        preferred_element_type=jnp.float32)        # (Bt, W, sub)

        # Concat-over-heads: head h lands at lane offset h*sub in the VMEM scratch.
        pv_cat_ref[:, lo:lo + sub_dim] = pv.astype(jnp.bfloat16).reshape(rows, sub_dim)

    # Single full-E-contraction output projection (depth-saturates the MXU) + bias.
    o_ref[...] = jnp.dot(pv_cat_ref[...], wo_ref[...],
                         preferred_element_type=jnp.float32) + bo_ref[...]


# --------------------------------------------------------------------------- #
# Wrapper helpers.                                                             #
# --------------------------------------------------------------------------- #
def _pick_batch_tile(B, W, target_rows=128):
    """Batch elements per grid step: aim for >=target_rows MXU rows per step.

    For real shapes (W >= 128) this returns 1, so the batch grid axis keeps
    several "parallel" steps (keeps both v7x TensorCores busy)."""
    bt = max(1, min(B, target_rows // max(W, 1)))
    while B % bt:
        bt -= 1
    return bt


def _vmem_limit_bytes():
    """~3/4 of physical VMEM, capped at 100 MiB: ~96 MiB on v5e/v6e, ~48 MiB on v7x."""
    try:
        physical = pltpu.get_tpu_info().vmem_capacity_bytes
    except Exception:
        physical = 64 * 1024 * 1024
    return min(int(physical * 3 // 4), 100 * 1024 * 1024)


# --------------------------------------------------------------------------- #
# Wrapper: fuses / pre-transposes parameters (layout plumbing only) and calls. #
# --------------------------------------------------------------------------- #
def multi_head_attn(x, wq, bq, wk, bk, wv, bv, wo, bo, *, num_heads, batch_tile=None):
    B, W, E = x.shape
    sub = E // num_heads
    scale = 1.0 / math.sqrt(sub)

    if batch_tile is None:
        batch_tile = _pick_batch_tile(B, W)
    assert B % batch_tile == 0
    rows = batch_tile * W

    # (H, sub, E) torch-Linear weights -> (E, H*sub) so x @ result == concat_h(x @ w[h].T)
    def head_major_t(w):
        return jnp.transpose(w, (2, 0, 1)).reshape(E, num_heads * sub)

    # Fold the attention scale into the Q projection (weights and bias).
    wqkv = jnp.concatenate(
        [head_major_t(wq) * scale, head_major_t(wk), head_major_t(wv)], axis=1
    ).astype(jnp.bfloat16)                                          # (E, 3E)
    bqkv = jnp.concatenate(
        [bq.reshape(-1) * scale, bk.reshape(-1), bv.reshape(-1)]
    ).reshape(1, 3 * E).astype(jnp.float32)                         # (1, 3E)
    wo_t = jnp.transpose(wo).astype(jnp.bfloat16)                   # (E, E)
    bo_row = bo.reshape(1, E).astype(jnp.float32)                   # (1, E)

    # Stream activations in bf16; flatten (B, W) so each grid step is a dense row slab.
    x2d = x.reshape(B * W, E).astype(jnp.bfloat16)

    kernel = functools.partial(_mha_kernel, num_heads=num_heads, sub_dim=sub,
                               batch_tile=batch_tile, window_sz=W, embed_sz=E)
    grid = (B // batch_tile,)

    def call(single_buffer_weights):
        def wspec(shape):
            # Grid-invariant operands: fetched once; single-buffer to halve their VMEM.
            if single_buffer_weights:
                return pl.BlockSpec(shape, lambda i: (0,) * len(shape),
                                    pipeline_mode=pl.Buffered(1))
            return pl.BlockSpec(shape, lambda i: (0,) * len(shape))

        out2d = pl.pallas_call(
            kernel,
            grid=grid,
            in_specs=[
                pl.BlockSpec((rows, E), lambda i: (i, 0)),          # x rows (streamed, bf16)
                wspec((E, 3 * E)),                                  # fused Wqkv (bf16)
                wspec((1, 3 * E)),                                  # fused qkv bias (f32)
                wspec((E, E)),                                      # Wo^T (bf16)
                wspec((1, E)),                                      # bo row (f32)
            ],
            out_specs=pl.BlockSpec((rows, E), lambda i: (i, 0)),
            out_shape=jax.ShapeDtypeStruct((B * W, E), jnp.float32),
            scratch_shapes=[pltpu.VMEM((rows, E), jnp.bfloat16)],   # per-head concat buffer
            compiler_params=pltpu.CompilerParams(
                dimension_semantics=("parallel",),
                vmem_limit_bytes=_vmem_limit_bytes(),
            ),
        )(x2d, wqkv, bqkv, wo_t, bo_row)
        return jax.block_until_ready(out2d)

    try:
        out2d = call(True)
    except Exception:
        # Fallback if this build rejects pl.Buffered(1) on pallas_call in_specs;
        # identical semantics, just default double-buffered invariant weights.
        out2d = call(False)

    return out2d.reshape(B, W, E)


# --------------------------------------------------------------------------- #
# Pure-JAX f32 reference (mirrors the PyTorch forward exactly).                #
# --------------------------------------------------------------------------- #
def reference(x, wq, bq, wk, bk, wv, bv, wo, bo):
    B, W, E = x.shape
    H, sub, _ = wq.shape
    mask = jnp.triu(jnp.full((W, W), -jnp.inf, dtype=jnp.float32), k=1)
    outs = []
    for h in range(H):
        q = x @ wq[h].T + bq[h]                       # (B, W, sub)
        k = x @ wk[h].T + bk[h]
        v = x @ wv[h].T + bv[h]
        s = jnp.einsum('bij,bkj->bik', q, k) / math.sqrt(sub) + mask
        p = jax.nn.softmax(s, axis=1)                 # softmax over query axis (dim=1)
        outs.append(jnp.einsum('bik,bkd->bid', p, v))
    xcat = jnp.concatenate(outs, axis=-1)             # (B, W, E)
    return xcat @ wo.T + bo


if __name__ == "__main__":
    # Small shapes consistent with the module.
    B, num_heads, embed_sz, window_sz = 2, 4, 32, 8
    sub_dim = embed_sz // num_heads

    key = jax.random.PRNGKey(0)
    keys = jax.random.split(key, 10)

    wq = jax.random.normal(keys[0], (num_heads, sub_dim, embed_sz), jnp.float32) * 0.1
    bq = jax.random.normal(keys[1], (num_heads, sub_dim), jnp.float32) * 0.1
    wk = jax.random.normal(keys[2], (num_heads, sub_dim, embed_sz), jnp.float32) * 0.1
    bk = jax.random.normal(keys[3], (num_heads, sub_dim), jnp.float32) * 0.1
    wv = jax.random.normal(keys[4], (num_heads, sub_dim, embed_sz), jnp.float32) * 0.1
    bv = jax.random.normal(keys[5], (num_heads, sub_dim), jnp.float32) * 0.1
    wo = jax.random.normal(keys[6], (embed_sz, embed_sz), jnp.float32) * 0.1
    bo = jax.random.normal(keys[7], (embed_sz,), jnp.float32) * 0.1

    x = jax.random.normal(keys[8], (B, window_sz, embed_sz), jnp.float32)

    out = multi_head_attn(x, wq, bq, wk, bk, wv, bv, wo, bo, num_heads=num_heads)
    out = jax.block_until_ready(out)

    ref = reference(x, wq, bq, wk, bk, wv, bv, wo, bo)
    assert out.shape == (B, window_sz, embed_sz)
    # Tolerance loosened vs the original 1e-5 because matmuls run in bf16 (f32 accum)
    # and the softmax denominator uses the approx EUP reciprocal.
    err = float(jnp.max(jnp.abs(out - ref)))
    assert jnp.allclose(out, ref, atol=3e-2, rtol=3e-2), \
        f"Pallas kernel mismatch vs reference (max abs err {err})"

    print("KERNEL_OK")
</pallas_src>

<mosaic_0001>
module attributes {stable_mosaic.version = 11 : i64} {
  func.func @_mha_kernel(%arg0: i32, %arg1: memref<16x32xbf16, #tpu.memory_space<vmem>>, %arg2: memref<32x96xbf16, #tpu.memory_space<vmem>>, %arg3: memref<1x96xf32, #tpu.memory_space<vmem>>, %arg4: memref<32x32xbf16, #tpu.memory_space<vmem>>, %arg5: memref<1x32xf32, #tpu.memory_space<vmem>>, %arg6: memref<16x32xf32, #tpu.memory_space<vmem>>, %arg7: memref<16x32xbf16, #tpu.memory_space<vmem>>) attributes {dimension_semantics = [#tpu.dimension_semantics<parallel>], iteration_bounds = array<i64: 1>, scalar_prefetch = 0 : i64, scratch_operands = 1 : i64, tpu.core_type = #tpu.core_type<tc>, window_params = [{transform_indices = @transform_0, window_bounds = array<i64: 16, 32>}, {pipeline_mode = #tpu.pipeline_mode<synchronous>, transform_indices = @transform_1, window_bounds = array<i64: 32, 96>}, {pipeline_mode = #tpu.pipeline_mode<synchronous>, transform_indices = @transform_2, window_bounds = array<i64: 1, 96>}, {pipeline_mode = #tpu.pipeline_mode<synchronous>, transform_indices = @transform_3, window_bounds = array<i64: 32, 32>}, {pipeline_mode = #tpu.pipeline_mode<synchronous>, transform_indices = @transform_4, window_bounds = array<i64: 1, 32>}, {transform_indices = @transform_5, window_bounds = array<i64: 16, 32>}]} {
    %c0 = arith.constant 0 : index
    %c0_0 = arith.constant 0 : index
    %0 = vector.load %arg1[%c0, %c0_0] : memref<16x32xbf16, #tpu.memory_space<vmem>>, vector<16x32xbf16>
    %c0_1 = arith.constant 0 : index
    %c0_2 = arith.constant 0 : index
    %1 = vector.load %arg2[%c0_1, %c0_2] : memref<32x96xbf16, #tpu.memory_space<vmem>>, vector<32x96xbf16>
    %cst = arith.constant dense<0.000000e+00> : vector<16x96xf32>
    %2 = tpu.matmul %0, %1, %cst {dimension_numbers = #tpu.dot_dimension_numbers<[1], [0], [0], [1], [0, 0, 1, 1], [], []>} : vector<16x32xbf16>, vector<32x96xbf16>, vector<16x96xf32> -> vector<16x96xf32>
    %c0_3 = arith.constant 0 : index
    %c0_4 = arith.constant 0 : index
    %3 = vector.load %arg3[%c0_3, %c0_4] : memref<1x96xf32, #tpu.memory_space<vmem>>, vector<1x96xf32>
    %4 = vector.broadcast %3 : vector<1x96xf32> to vector<16x96xf32>
    %5 = arith.addf %2, %4 : vector<16x96xf32>
    %6 = arith.truncf %5 : vector<16x96xf32> to vector<16x96xbf16>
    %7 = vector.shape_cast %6 : vector<16x96xbf16> to vector<2x8x96xbf16>
    %8 = tpu.iota {dimensions = array<i32: 1>} : vector<2x8x8xi32>
    %9 = tpu.iota {dimensions = array<i32: 2>} : vector<2x8x8xi32>
    %10 = arith.cmpi sgt, %9, %8 : vector<2x8x8xi32>
    %11 = vector.extract_strided_slice %7 {offsets = [0, 0, 0], sizes = [2, 8, 8], strides = [1, 1, 1]} : vector<2x8x96xbf16> to vector<2x8x8xbf16>
    %12 = vector.extract_strided_slice %7 {offsets = [0, 0, 32], sizes = [2, 8, 8], strides = [1, 1, 1]} : vector<2x8x96xbf16> to vector<2x8x8xbf16>
    %13 = vector.extract_strided_slice %7 {offsets = [0, 0, 64], sizes = [2, 8, 8], strides = [1, 1, 1]} : vector<2x8x96xbf16> to vector<2x8x8xbf16>
    "tpu.trace_start"() <{level = 10 : i32, message = "bqd,bkd->bqk"}> : () -> ()
    %cst_5 = arith.constant dense<0.000000e+00> : vector<2x8x8xf32>
    %14 = tpu.matmul %11, %12, %cst_5 {dimension_numbers = #tpu.dot_dimension_numbers<[2], [2], [1], [1], [0, 0, 0, 1, 1, 1], [0], [0]>} : vector<2x8x8xbf16>, vector<2x8x8xbf16>, vector<2x8x8xf32> -> vector<2x8x8xf32>
    %cst_6 = arith.constant 0xFF800000 : f32
    "tpu.trace_stop"() : () -> ()
    %15 = vector.broadcast %cst_6 : f32 to vector<2x8x8xf32>
    %16 = arith.select %10, %15, %14 : vector<2x8x8xi1>, vector<2x8x8xf32>
    %cst_7 = arith.constant dense<0xFF800000> : vector<2x8xf32>
    %17 = vector.multi_reduction <maximumf>, %16, %cst_7 [1] : vector<2x8x8xf32> to vector<2x8xf32>
    %18 = vector.shape_cast %17 : vector<2x8xf32> to vector<2x1x8xf32>
    %19 = vector.broadcast %18 : vector<2x1x8xf32> to vector<2x8x8xf32>
    %20 = arith.subf %16, %19 : vector<2x8x8xf32>
    %21 = math.exp %20 : vector<2x8x8xf32>
    %cst_8 = arith.constant dense<0.000000e+00> : vector<2x8xf32>
    %22 = vector.multi_reduction <add>, %21, %cst_8 [1] : vector<2x8x8xf32> to vector<2x8xf32>
    %23 = vector.shape_cast %22 : vector<2x8xf32> to vector<2x1x8xf32>
    %24 = tpu.reciprocal %23 {approx = true} : vector<2x1x8xf32> -> vector<2x1x8xf32>
    %25 = vector.broadcast %24 : vector<2x1x8xf32> to vector<2x8x8xf32>
    %26 = arith.mulf %21, %25 : vector<2x8x8xf32>
    %27 = arith.truncf %26 : vector<2x8x8xf32> to vector<2x8x8xbf16>
    "tpu.trace_start"() <{level = 10 : i32, message = "bqk,bkd->bqd"}> : () -> ()
    %cst_9 = arith.constant dense<0.000000e+00> : vector<2x8x8xf32>
    %28 = tpu.matmul %27, %13, %cst_9 {dimension_numbers = #tpu.dot_dimension_numbers<[2], [1], [1], [2], [0, 0, 0, 1, 1, 2], [0], [0]>} : vector<2x8x8xbf16>, vector<2x8x8xbf16>, vector<2x8x8xf32> -> vector<2x8x8xf32>
    "tpu.trace_stop"() : () -> ()
    %29 = arith.truncf %28 : vector<2x8x8xf32> to vector<2x8x8xbf16>
    %30 = vector.shape_cast %29 : vector<2x8x8xbf16> to vector<16x8xbf16>
    %c0_10 = arith.constant 0 : index
    %c0_11 = arith.constant 0 : index
    %31 = vector.load %arg7[%c0_10, %c0_11] : memref<16x32xbf16, #tpu.memory_space<vmem>>, vector<16x8xbf16>
    tpu.vector_store %arg7[%c0_10, %c0_11], %30 {strides = array<i32>} : memref<16x32xbf16, #tpu.memory_space<vmem>>, vector<16x8xbf16>,
    %32 = vector.extract_strided_slice %7 {offsets = [0, 0, 8], sizes = [2, 8, 8], strides = [1, 1, 1]} : vector<2x8x96xbf16> to vector<2x8x8xbf16>
    %33 = vector.extract_strided_slice %7 {offsets = [0, 0, 40], sizes = [2, 8, 8], strides = [1, 1, 1]} : vector<2x8x96xbf16> to vector<2x8x8xbf16>
    %34 = vector.extract_strided_slice %7 {offsets = [0, 0, 72], sizes = [2, 8, 8], strides = [1, 1, 1]} : vector<2x8x96xbf16> to vector<2x8x8xbf16>
    "tpu.trace_start"() <{level = 10 : i32, message = "bqd,bkd->bqk"}> : () -> ()
    %cst_12 = arith.constant dense<0.000000e+00> : vector<2x8x8xf32>
    %35 = tpu.matmul %32, %33, %cst_12 {dimension_numbers = #tpu.dot_dimension_numbers<[2], [2], [1], [1], [0, 0, 0, 1, 1, 1], [0], [0]>} : vector<2x8x8xbf16>, vector<2x8x8xbf16>, vector<2x8x8xf32> -> vector<2x8x8xf32>
    %cst_13 = arith.constant 0xFF800000 : f32
    "tpu.trace_stop"() : () -> ()
    %36 = vector.broadcast %cst_13 : f32 to vector<2x8x8xf32>
    %37 = arith.select %10, %36, %35 : vector<2x8x8xi1>, vector<2x8x8xf32>
    %cst_14 = arith.constant dense<0xFF800000> : vector<2x8xf32>
    %38 = vector.multi_reduction <maximumf>, %37, %cst_14 [1] : vector<2x8x8xf32> to vector<2x8xf32>
    %39 = vector.shape_cast %38 : vector<2x8xf32> to vector<2x1x8xf32>
    %40 = vector.broadcast %39 : vector<2x1x8xf32> to vector<2x8x8xf32>
    %41 = arith.subf %37, %40 : vector<2x8x8xf32>
    %42 = math.exp %41 : vector<2x8x8xf32>
    %cst_15 = arith.constant dense<0.000000e+00> : vector<2x8xf32>
    %43 = vector.multi_reduction <add>, %42, %cst_15 [1] : vector<2x8x8xf32> to vector<2x8xf32>
    %44 = vector.shape_cast %43 : vector<2x8xf32> to vector<2x1x8xf32>
    %45 = tpu.reciprocal %44 {approx = true} : vector<2x1x8xf32> -> vector<2x1x8xf32>
    %46 = vector.broadcast %45 : vector<2x1x8xf32> to vector<2x8x8xf32>
    %47 = arith.mulf %42, %46 : vector<2x8x8xf32>
    %48 = arith.truncf %47 : vector<2x8x8xf32> to vector<2x8x8xbf16>
    "tpu.trace_start"() <{level = 10 : i32, message = "bqk,bkd->bqd"}> : () -> ()
    %cst_16 = arith.constant dense<0.000000e+00> : vector<2x8x8xf32>
    %49 = tpu.matmul %48, %34, %cst_16 {dimension_numbers = #tpu.dot_dimension_numbers<[2], [1], [1], [2], [0, 0, 0, 1, 1, 2], [0], [0]>} : vector<2x8x8xbf16>, vector<2x8x8xbf16>, vector<2x8x8xf32> -> vector<2x8x8xf32>
    "tpu.trace_stop"() : () -> ()
    %50 = arith.truncf %49 : vector<2x8x8xf32> to vector<2x8x8xbf16>
    %51 = vector.shape_cast %50 : vector<2x8x8xbf16> to vector<16x8xbf16>
    %c0_17 = arith.constant 0 : index
    %c8 = arith.constant 8 : index
    %52 = vector.load %arg7[%c0_17, %c8] : memref<16x32xbf16, #tpu.memory_space<vmem>>, vector<16x8xbf16>
    tpu.vector_store %arg7[%c0_17, %c8], %51 {strides = array<i32>} : memref<16x32xbf16, #tpu.memory_space<vmem>>, vector<16x8xbf16>,
    %53 = vector.extract_strided_slice %7 {offsets = [0, 0, 16], sizes = [2, 8, 8], strides = [1, 1, 1]} : vector<2x8x96xbf16> to vector<2x8x8xbf16>
    %54 = vector.extract_strided_slice %7 {offsets = [0, 0, 48], sizes = [2, 8, 8], strides = [1, 1, 1]} : vector<2x8x96xbf16> to vector<2x8x8xbf16>
    %55 = vector.extract_strided_slice %7 {offsets = [0, 0, 80], sizes = [2, 8, 8], strides = [1, 1, 1]} : vector<2x8x96xbf16> to vector<2x8x8xbf16>
    "tpu.trace_start"() <{level = 10 : i32, message = "bqd,bkd->bqk"}> : () -> ()
    %cst_18 = arith.constant dense<0.000000e+00> : vector<2x8x8xf32>
    %56 = tpu.matmul %53, %54, %cst_18 {dimension_numbers = #tpu.dot_dimension_numbers<[2], [2], [1], [1], [0, 0, 0, 1, 1, 1], [0], [0]>} : vector<2x8x8xbf16>, vector<2x8x8xbf16>, vector<2x8x8xf32> -> vector<2x8x8xf32>
    %cst_19 = arith.constant 0xFF800000 : f32
    "tpu.trace_stop"() : () -> ()
    %57 = vector.broadcast %cst_19 : f32 to vector<2x8x8xf32>
    %58 = arith.select %10, %57, %56 : vector<2x8x8xi1>, vector<2x8x8xf32>
    %cst_20 = arith.constant dense<0xFF800000> : vector<2x8xf32>
    %59 = vector.multi_reduction <maximumf>, %58, %cst_20 [1] : vector<2x8x8xf32> to vector<2x8xf32>
    %60 = vector.shape_cast %59 : vector<2x8xf32> to vector<2x1x8xf32>
    %61 = vector.broadcast %60 : vector<2x1x8xf32> to vector<2x8x8xf32>
    %62 = arith.subf %58, %61 : vector<2x8x8xf32>
    %63 = math.exp %62 : vector<2x8x8xf32>
    %cst_21 = arith.constant dense<0.000000e+00> : vector<2x8xf32>
    %64 = vector.multi_reduction <add>, %63, %cst_21 [1] : vector<2x8x8xf32> to vector<2x8xf32>
    %65 = vector.shape_cast %64 : vector<2x8xf32> to vector<2x1x8xf32>
    %66 = tpu.reciprocal %65 {approx = true} : vector<2x1x8xf32> -> vector<2x1x8xf32>
    %67 = vector.broadcast %66 : vector<2x1x8xf32> to vector<2x8x8xf32>
    %68 = arith.mulf %63, %67 : vector<2x8x8xf32>
    %69 = arith.truncf %68 : vector<2x8x8xf32> to vector<2x8x8xbf16>
    "tpu.trace_start"() <{level = 10 : i32, message = "bqk,bkd->bqd"}> : () -> ()
    %cst_22 = arith.constant dense<0.000000e+00> : vector<2x8x8xf32>
    %70 = tpu.matmul %69, %55, %cst_22 {dimension_numbers = #tpu.dot_dimension_numbers<[2], [1], [1], [2], [0, 0, 0, 1, 1, 2], [0], [0]>} : vector<2x8x8xbf16>, vector<2x8x8xbf16>, vector<2x8x8xf32> -> vector<2x8x8xf32>
    "tpu.trace_stop"() : () -> ()
    %71 = arith.truncf %70 : vector<2x8x8xf32> to vector<2x8x8xbf16>
    %72 = vector.shape_cast %71 : vector<2x8x8xbf16> to vector<16x8xbf16>
    %c0_23 = arith.constant 0 : index
    %c16 = arith.constant 16 : index
    %73 = vector.load %arg7[%c0_23, %c16] : memref<16x32xbf16, #tpu.memory_space<vmem>>, vector<16x8xbf16>
    tpu.vector_store %arg7[%c0_23, %c16], %72 {strides = array<i32>} : memref<16x32xbf16, #tpu.memory_space<vmem>>, vector<16x8xbf16>,
    %74 = vector.extract_strided_slice %7 {offsets = [0, 0, 24], sizes = [2, 8, 8], strides = [1, 1, 1]} : vector<2x8x96xbf16> to vector<2x8x8xbf16>
    %75 = vector.extract_strided_slice %7 {offsets = [0, 0, 56], sizes = [2, 8, 8], strides = [1, 1, 1]} : vector<2x8x96xbf16> to vector<2x8x8xbf16>
    %76 = vector.extract_strided_slice %7 {offsets = [0, 0, 88], sizes = [2, 8, 8], strides = [1, 1, 1]} : vector<2x8x96xbf16> to vector<2x8x8xbf16>
    "tpu.trace_start"() <{level = 10 : i32, message = "bqd,bkd->bqk"}> : () -> ()
    %cst_24 = arith.constant dense<0.000000e+00> : vector<2x8x8xf32>
    %77 = tpu.matmul %74, %75, %cst_24 {dimension_numbers = #tpu.dot_dimension_numbers<[2], [2], [1], [1], [0, 0, 0, 1, 1, 1], [0], [0]>} : vector<2x8x8xbf16>, vector<2x8x8xbf16>, vector<2x8x8xf32> -> vector<2x8x8xf32>
    %cst_25 = arith.constant 0xFF800000 : f32
    "tpu.trace_stop"() : () -> ()
    %78 = vector.broadcast %cst_25 : f32 to vector<2x8x8xf32>
    %79 = arith.select %10, %78, %77 : vector<2x8x8xi1>, vector<2x8x8xf32>
    %cst_26 = arith.constant dense<0xFF800000> : vector<2x8xf32>
    %80 = vector.multi_reduction <maximumf>, %79, %cst_26 [1] : vector<2x8x8xf32> to vector<2x8xf32>
    %81 = vector.shape_cast %80 : vector<2x8xf32> to vector<2x1x8xf32>
    %82 = vector.broadcast %81 : vector<2x1x8xf32> to vector<2x8x8xf32>
    %83 = arith.subf %79, %82 : vector<2x8x8xf32>
    %84 = math.exp %83 : vector<2x8x8xf32>
    %cst_27 = arith.constant dense<0.000000e+00> : vector<2x8xf32>
    %85 = vector.multi_reduction <add>, %84, %cst_27 [1] : vector<2x8x8xf32> to vector<2x8xf32>
    %86 = vector.shape_cast %85 : vector<2x8xf32> to vector<2x1x8xf32>
    %87 = tpu.reciprocal %86 {approx = true} : vector<2x1x8xf32> -> vector<2x1x8xf32>
    %88 = vector.broadcast %87 : vector<2x1x8xf32> to vector<2x8x8xf32>
    %89 = arith.mulf %84, %88 : vector<2x8x8xf32>
    %90 = arith.truncf %89 : vector<2x8x8xf32> to vector<2x8x8xbf16>
    "tpu.trace_start"() <{level = 10 : i32, message = "bqk,bkd->bqd"}> : () -> ()
    %cst_28 = arith.constant dense<0.000000e+00> : vector<2x8x8xf32>
    %91 = tpu.matmul %90, %76, %cst_28 {dimension_numbers = #tpu.dot_dimension_numbers<[2], [1], [1], [2], [0, 0, 0, 1, 1, 2], [0], [0]>} : vector<2x8x8xbf16>, vector<2x8x8xbf16>, vector<2x8x8xf32> -> vector<2x8x8xf32>
    "tpu.trace_stop"() : () -> ()
    %92 = arith.truncf %91 : vector<2x8x8xf32> to vector<2x8x8xbf16>
    %93 = vector.shape_cast %92 : vector<2x8x8xbf16> to vector<16x8xbf16>
    %c0_29 = arith.constant 0 : index
    %c24 = arith.constant 24 : index
    %94 = vector.load %arg7[%c0_29, %c24] : memref<16x32xbf16, #tpu.memory_space<vmem>>, vector<16x8xbf16>
    tpu.vector_store %arg7[%c0_29, %c24], %93 {strides = array<i32>} : memref<16x32xbf16, #tpu.memory_space<vmem>>, vector<16x8xbf16>,
    %c0_30 = arith.constant 0 : index
    %c0_31 = arith.constant 0 : index
    %95 = vector.load %arg7[%c0_30, %c0_31] : memref<16x32xbf16, #tpu.memory_space<vmem>>, vector<16x32xbf16>
    %c0_32 = arith.constant 0 : index
    %c0_33 = arith.constant 0 : index
    %96 = vector.load %arg4[%c0_32, %c0_33] : memref<32x32xbf16, #tpu.memory_space<vmem>>, vector<32x32xbf16>
    %cst_34 = arith.constant dense<0.000000e+00> : vector<16x32xf32>
    %97 = tpu.matmul %95, %96, %cst_34 {dimension_numbers = #tpu.dot_dimension_numbers<[1], [0], [0], [1], [0, 0, 1, 1], [], []>} : vector<16x32xbf16>, vector<32x32xbf16>, vector<16x32xf32> -> vector<16x32xf32>
    %c0_35 = arith.constant 0 : index
    %c0_36 = arith.constant 0 : index
    %98 = vector.load %arg5[%c0_35, %c0_36] : memref<1x32xf32, #tpu.memory_space<vmem>>, vector<1x32xf32>
    %99 = vector.broadcast %98 : vector<1x32xf32> to vector<16x32xf32>
    %100 = arith.addf %97, %99 : vector<16x32xf32>
    %c0_37 = arith.constant 0 : index
    %c0_38 = arith.constant 0 : index
    %101 = vector.load %arg6[%c0_37, %c0_38] : memref<16x32xf32, #tpu.memory_space<vmem>>, vector<16x32xf32>
    tpu.vector_store %arg6[%c0_37, %c0_38], %100 {strides = array<i32>} : memref<16x32xf32, #tpu.memory_space<vmem>>, vector<16x32xf32>,
    return
  }
  func.func @transform_0(%arg0: i32) -> (i32, i32) {
    %c0_i32 = arith.constant 0 : i32
    %c0_i32_0 = arith.constant 0 : i32
    return %arg0, %c0_i32 : i32, i32
  }
  func.func @transform_1(%arg0: i32) -> (i32, i32) {
    %c0_i32 = arith.constant 0 : i32
    %c0_i32_0 = arith.constant 0 : i32
    %c0_i32_1 = arith.constant 0 : i32
    return %c0_i32, %c0_i32_0 : i32, i32
  }
  func.func @transform_2(%arg0: i32) -> (i32, i32) {
    %c0_i32 = arith.constant 0 : i32
    %c0_i32_0 = arith.constant 0 : i32
    %c0_i32_1 = arith.constant 0 : i32
    return %c0_i32, %c0_i32_0 : i32, i32
  }
  func.func @transform_3(%arg0: i32) -> (i32, i32) {
    %c0_i32 = arith.constant 0 : i32
    %c0_i32_0 = arith.constant 0 : i32
    %c0_i32_1 = arith.constant 0 : i32
    return %c0_i32, %c0_i32_0 : i32, i32
  }
  func.func @transform_4(%arg0: i32) -> (i32, i32) {
    %c0_i32 = arith.constant 0 : i32
    %c0_i32_0 = arith.constant 0 : i32
    %c0_i32_1 = arith.constant 0 : i32
    return %c0_i32, %c0_i32_0 : i32, i32
  }
  func.func @transform_5(%arg0: i32) -> (i32, i32) {
    %c0_i32 = arith.constant 0 : i32
    %c0_i32_0 = arith.constant 0 : i32
    return %arg0, %c0_i32 : i32, i32
  }
}

module attributes {stable_mosaic.version = 11 : i64} {
  func.func @_mha_kernel(%arg0: i32, %arg1: memref<16x32xbf16, #tpu.memory_space<vmem>>, %arg2: memref<32x96xbf16, #tpu.memory_space<vmem>>, %arg3: memref<1x96xf32, #tpu.memory_space<vmem>>, %arg4: memref<32x32xbf16, #tpu.memory_space<vmem>>, %arg5: memref<1x32xf32, #tpu.memory_space<vmem>>, %arg6: memref<16x32xf32, #tpu.memory_space<vmem>>, %arg7: memref<16x32xbf16, #tpu.memory_space<vmem>>) attributes {dimension_semantics = [#tpu.dimension_semantics<parallel>], iteration_bounds = array<i64: 1>, scalar_prefetch = 0 : i64, scratch_operands = 1 : i64, tpu.core_type = #tpu.core_type<tc>, window_params = [{transform_indices = @transform_0, window_bounds = array<i64: 16, 32>}, {pipeline_mode = #tpu.pipeline_mode<synchronous>, transform_indices = @transform_1, window_bounds = array<i64: 32, 96>}, {pipeline_mode = #tpu.pipeline_mode<synchronous>, transform_indices = @transform_2, window_bounds = array<i64: 1, 96>}, {pipeline_mode = #tpu.pipeline_mode<synchronous>, transform_indices = @transform_3, window_bounds = array<i64: 32, 32>}, {pipeline_mode = #tpu.pipeline_mode<synchronous>, transform_indices = @transform_4, window_bounds = array<i64: 1, 32>}, {transform_indices = @transform_5, window_bounds = array<i64: 16, 32>}]} {
    %c0 = arith.constant 0 : index
    %c0_0 = arith.constant 0 : index
    %0 = vector.load %arg1[%c0, %c0_0] : memref<16x32xbf16, #tpu.memory_space<vmem>>, vector<16x32xbf16>
    %c0_1 = arith.constant 0 : index
    %c0_2 = arith.constant 0 : index
    %1 = vector.load %arg2[%c0_1, %c0_2] : memref<32x96xbf16, #tpu.memory_space<vmem>>, vector<32x96xbf16>
    %cst = arith.constant dense<0.000000e+00> : vector<16x96xf32>
    %2 = tpu.matmul %0, %1, %cst {dimension_numbers = #tpu.dot_dimension_numbers<[1], [0], [0], [1], [0, 0, 1, 1], [], []>} : vector<16x32xbf16>, vector<32x96xbf16>, vector<16x96xf32> -> vector<16x96xf32>
    %c0_3 = arith.constant 0 : index
    %c0_4 = arith.constant 0 : index
    %3 = vector.load %arg3[%c0_3, %c0_4] : memref<1x96xf32, #tpu.memory_space<vmem>>, vector<1x96xf32>
    %4 = vector.broadcast %3 : vector<1x96xf32> to vector<16x96xf32>
    %5 = arith.addf %2, %4 : vector<16x96xf32>
    %6 = arith.truncf %5 : vector<16x96xf32> to vector<16x96xbf16>
    %7 = vector.shape_cast %6 : vector<16x96xbf16> to vector<2x8x96xbf16>
    %8 = tpu.iota {dimensions = array<i32: 1>} : vector<2x8x8xi32>
    %9 = tpu.iota {dimensions = array<i32: 2>} : vector<2x8x8xi32>
    %10 = arith.cmpi sgt, %9, %8 : vector<2x8x8xi32>
    %11 = vector.extract_strided_slice %7 {offsets = [0, 0, 0], sizes = [2, 8, 8], strides = [1, 1, 1]} : vector<2x8x96xbf16> to vector<2x8x8xbf16>
    %12 = vector.extract_strided_slice %7 {offsets = [0, 0, 32], sizes = [2, 8, 8], strides = [1, 1, 1]} : vector<2x8x96xbf16> to vector<2x8x8xbf16>
    %13 = vector.extract_strided_slice %7 {offsets = [0, 0, 64], sizes = [2, 8, 8], strides = [1, 1, 1]} : vector<2x8x96xbf16> to vector<2x8x8xbf16>
    "tpu.trace_start"() <{level = 10 : i32, message = "bqd,bkd->bqk"}> : () -> ()
    %cst_5 = arith.constant dense<0.000000e+00> : vector<2x8x8xf32>
    %14 = tpu.matmul %11, %12, %cst_5 {dimension_numbers = #tpu.dot_dimension_numbers<[2], [2], [1], [1], [0, 0, 0, 1, 1, 1], [0], [0]>} : vector<2x8x8xbf16>, vector<2x8x8xbf16>, vector<2x8x8xf32> -> vector<2x8x8xf32>
    %cst_6 = arith.constant 0xFF800000 : f32
    "tpu.trace_stop"() : () -> ()
    %15 = vector.broadcast %cst_6 : f32 to vector<2x8x8xf32>
    %16 = arith.select %10, %15, %14 : vector<2x8x8xi1>, vector<2x8x8xf32>
    %cst_7 = arith.constant dense<0xFF800000> : vector<2x8xf32>
    %17 = vector.multi_reduction <maximumf>, %16, %cst_7 [1] : vector<2x8x8xf32> to vector<2x8xf32>
    %18 = vector.shape_cast %17 : vector<2x8xf32> to vector<2x1x8xf32>
    %19 = vector.broadcast %18 : vector<2x1x8xf32> to vector<2x8x8xf32>
    %20 = arith.subf %16, %19 : vector<2x8x8xf32>
    %21 = math.exp %20 : vector<2x8x8xf32>
    %cst_8 = arith.constant dense<0.000000e+00> : vector<2x8xf32>
    %22 = vector.multi_reduction <add>, %21, %cst_8 [1] : vector<2x8x8xf32> to vector<2x8xf32>
    %23 = vector.shape_cast %22 : vector<2x8xf32> to vector<2x1x8xf32>
    %24 = tpu.reciprocal %23 {approx = true} : vector<2x1x8xf32> -> vector<2x1x8xf32>
    %25 = vector.broadcast %24 : vector<2x1x8xf32> to vector<2x8x8xf32>
    %26 = arith.mulf %21, %25 : vector<2x8x8xf32>
    %27 = arith.truncf %26 : vector<2x8x8xf32> to vector<2x8x8xbf16>
    "tpu.trace_start"() <{level = 10 : i32, message = "bqk,bkd->bqd"}> : () -> ()
    %cst_9 = arith.constant dense<0.000000e+00> : vector<2x8x8xf32>
    %28 = tpu.matmul %27, %13, %cst_9 {dimension_numbers = #tpu.dot_dimension_numbers<[2], [1], [1], [2], [0, 0, 0, 1, 1, 2], [0], [0]>} : vector<2x8x8xbf16>, vector<2x8x8xbf16>, vector<2x8x8xf32> -> vector<2x8x8xf32>
    "tpu.trace_stop"() : () -> ()
    %29 = arith.truncf %28 : vector<2x8x8xf32> to vector<2x8x8xbf16>
    %30 = vector.shape_cast %29 : vector<2x8x8xbf16> to vector<16x8xbf16>
    %c0_10 = arith.constant 0 : index
    %c0_11 = arith.constant 0 : index
    %31 = vector.load %arg7[%c0_10, %c0_11] : memref<16x32xbf16, #tpu.memory_space<vmem>>, vector<16x8xbf16>
    tpu.vector_store %arg7[%c0_10, %c0_11], %30 {strides = array<i32>} : memref<16x32xbf16, #tpu.memory_space<vmem>>, vector<16x8xbf16>,
    %32 = vector.extract_strided_slice %7 {offsets = [0, 0, 8], sizes = [2, 8, 8], strides = [1, 1, 1]} : vector<2x8x96xbf16> to vector<2x8x8xbf16>
    %33 = vector.extract_strided_slice %7 {offsets = [0, 0, 40], sizes = [2, 8, 8], strides = [1, 1, 1]} : vector<2x8x96xbf16> to vector<2x8x8xbf16>
    %34 = vector.extract_strided_slice %7 {offsets = [0, 0, 72], sizes = [2, 8, 8], strides = [1, 1, 1]} : vector<2x8x96xbf16> to vector<2x8x8xbf16>
    "tpu.trace_start"() <{level = 10 : i32, message = "bqd,bkd->bqk"}> : () -> ()
    %cst_12 = arith.constant dense<0.000000e+00> : vector<2x8x8xf32>
    %35 = tpu.matmul %32, %33, %cst_12 {dimension_numbers = #tpu.dot_dimension_numbers<[2], [2], [1], [1], [0, 0, 0, 1, 1, 1], [0], [0]>} : vector<2x8x8xbf16>, vector<2x8x8xbf16>, vector<2x8x8xf32> -> vector<2x8x8xf32>
    %cst_13 = arith.constant 0xFF800000 : f32
    "tpu.trace_stop"() : () -> ()
    %36 = vector.broadcast %cst_13 : f32 to vector<2x8x8xf32>
    %37 = arith.select %10, %36, %35 : vector<2x8x8xi1>, vector<2x8x8xf32>
    %cst_14 = arith.constant dense<0xFF800000> : vector<2x8xf32>
    %38 = vector.multi_reduction <maximumf>, %37, %cst_14 [1] : vector<2x8x8xf32> to vector<2x8xf32>
    %39 = vector.shape_cast %38 : vector<2x8xf32> to vector<2x1x8xf32>
    %40 = vector.broadcast %39 : vector<2x1x8xf32> to vector<2x8x8xf32>
    %41 = arith.subf %37, %40 : vector<2x8x8xf32>
    %42 = math.exp %41 : vector<2x8x8xf32>
    %cst_15 = arith.constant dense<0.000000e+00> : vector<2x8xf32>
    %43 = vector.multi_reduction <add>, %42, %cst_15 [1] : vector<2x8x8xf32> to vector<2x8xf32>
    %44 = vector.shape_cast %43 : vector<2x8xf32> to vector<2x1x8xf32>
    %45 = tpu.reciprocal %44 {approx = true} : vector<2x1x8xf32> -> vector<2x1x8xf32>
    %46 = vector.broadcast %45 : vector<2x1x8xf32> to vector<2x8x8xf32>
    %47 = arith.mulf %42, %46 : vector<2x8x8xf32>
    %48 = arith.truncf %47 : vector<2x8x8xf32> to vector<2x8x8xbf16>
    "tpu.trace_start"() <{level = 10 : i32, message = "bqk,bkd->bqd"}> : () -> ()
    %cst_16 = arith.constant dense<0.000000e+00> : vector<2x8x8xf32>
    %49 = tpu.matmul %48, %34, %cst_16 {dimension_numbers = #tpu.dot_dimension_numbers<[2], [1], [1], [2], [0, 0, 0, 1, 1, 2], [0], [0]>} : vector<2x8x8xbf16>, vector<2x8x8xbf16>, vector<2x8x8xf32> -> vector<2x8x8xf32>
    "tpu.trace_stop"() : () -> ()
    %50 = arith.truncf %49 : vector<2x8x8xf32> to vector<2x8x8xbf16>
    %51 = vector.shape_cast %50 : vector<2x8x8xbf16> to vector<16x8xbf16>
    %c0_17 = arith.constant 0 : index
    %c8 = arith.constant 8 : index
    %52 = vector.load %arg7[%c0_17, %c8] : memref<16x32xbf16, #tpu.memory_space<vmem>>, vector<16x8xbf16>
    tpu.vector_store %arg7[%c0_17, %c8], %51 {strides = array<i32>} : memref<16x32xbf16, #tpu.memory_space<vmem>>, vector<16x8xbf16>,
    %53 = vector.extract_strided_slice %7 {offsets = [0, 0, 16], sizes = [2, 8, 8], strides = [1, 1, 1]} : vector<2x8x96xbf16> to vector<2x8x8xbf16>
    %54 = vector.extract_strided_slice %7 {offsets = [0, 0, 48], sizes = [2, 8, 8], strides = [1, 1, 1]} : vector<2x8x96xbf16> to vector<2x8x8xbf16>
    %55 = vector.extract_strided_slice %7 {offsets = [0, 0, 80], sizes = [2, 8, 8], strides = [1, 1, 1]} : vector<2x8x96xbf16> to vector<2x8x8xbf16>
    "tpu.trace_start"() <{level = 10 : i32, message = "bqd,bkd->bqk"}> : () -> ()
    %cst_18 = arith.constant dense<0.000000e+00> : vector<2x8x8xf32>
    %56 = tpu.matmul %53, %54, %cst_18 {dimension_numbers = #tpu.dot_dimension_numbers<[2], [2], [1], [1], [0, 0, 0, 1, 1, 1], [0], [0]>} : vector<2x8x8xbf16>, vector<2x8x8xbf16>, vector<2x8x8xf32> -> vector<2x8x8xf32>
    %cst_19 = arith.constant 0xFF800000 : f32
    "tpu.trace_stop"() : () -> ()
    %57 = vector.broadcast %cst_19 : f32 to vector<2x8x8xf32>
    %58 = arith.select %10, %57, %56 : vector<2x8x8xi1>, vector<2x8x8xf32>
    %cst_20 = arith.constant dense<0xFF800000> : vector<2x8xf32>
    %59 = vector.multi_reduction <maximumf>, %58, %cst_20 [1] : vector<2x8x8xf32> to vector<2x8xf32>
    %60 = vector.shape_cast %59 : vector<2x8xf32> to vector<2x1x8xf32>
    %61 = vector.broadcast %60 : vector<2x1x8xf32> to vector<2x8x8xf32>
    %62 = arith.subf %58, %61 : vector<2x8x8xf32>
    %63 = math.exp %62 : vector<2x8x8xf32>
    %cst_21 = arith.constant dense<0.000000e+00> : vector<2x8xf32>
    %64 = vector.multi_reduction <add>, %63, %cst_21 [1] : vector<2x8x8xf32> to vector<2x8xf32>
    %65 = vector.shape_cast %64 : vector<2x8xf32> to vector<2x1x8xf32>
    %66 = tpu.reciprocal %65 {approx = true} : vector<2x1x8xf32> -> vector<2x1x8xf32>
    %67 = vector.broadcast %66 : vector<2x1x8xf32> to vector<2x8x8xf32>
    %68 = arith.mulf %63, %67 : vector<2x8x8xf32>
    %69 = arith.truncf %68 : vector<2x8x8xf32> to vector<2x8x8xbf16>
    "tpu.trace_start"() <{level = 10 : i32, message = "bqk,bkd->bqd"}> : () -> ()
    %cst_22 = arith.constant dense<0.000000e+00> : vector<2x8x8xf32>
    %70 = tpu.matmul %69, %55, %cst_22 {dimension_numbers = #tpu.dot_dimension_numbers<[2], [1], [1], [2], [0, 0, 0, 1, 1, 2], [0], [0]>} : vector<2x8x8xbf16>, vector<2x8x8xbf16>, vector<2x8x8xf32> -> vector<2x8x8xf32>
    "tpu.trace_stop"() : () -> ()
    %71 = arith.truncf %70 : vector<2x8x8xf32> to vector<2x8x8xbf16>
    %72 = vector.shape_cast %71 : vector<2x8x8xbf16> to vector<16x8xbf16>
    %c0_23 = arith.constant 0 : index
    %c16 = arith.constant 16 : index
    %73 = vector.load %arg7[%c0_23, %c16] : memref<16x32xbf16, #tpu.memory_space<vmem>>, vector<16x8xbf16>
    tpu.vector_store %arg7[%c0_23, %c16], %72 {strides = array<i32>} : memref<16x32xbf16, #tpu.memory_space<vmem>>, vector<16x8xbf16>,
    %74 = vector.extract_strided_slice %7 {offsets = [0, 0, 24], sizes = [2, 8, 8], strides = [1, 1, 1]} : vector<2x8x96xbf16> to vector<2x8x8xbf16>
    %75 = vector.extract_strided_slice %7 {offsets = [0, 0, 56], sizes = [2, 8, 8], strides = [1, 1, 1]} : vector<2x8x96xbf16> to vector<2x8x8xbf16>
    %76 = vector.extract_strided_slice %7 {offsets = [0, 0, 88], sizes = [2, 8, 8], strides = [1, 1, 1]} : vector<2x8x96xbf16> to vector<2x8x8xbf16>
    "tpu.trace_start"() <{level = 10 : i32, message = "bqd,bkd->bqk"}> : () -> ()
    %cst_24 = arith.constant dense<0.000000e+00> : vector<2x8x8xf32>
    %77 = tpu.matmul %74, %75, %cst_24 {dimension_numbers = #tpu.dot_dimension_numbers<[2], [2], [1], [1], [0, 0, 0, 1, 1, 1], [0], [0]>} : vector<2x8x8xbf16>, vector<2x8x8xbf16>, vector<2x8x8xf32> -> vector<2x8x8xf32>
    %cst_25 = arith.constant 0xFF800000 : f32
    "tpu.trace_stop"() : () -> ()
    %78 = vector.broadcast %cst_25 : f32 to vector<2x8x8xf32>
    %79 = arith.select %10, %78, %77 : vector<2x8x8xi1>, vector<2x8x8xf32>
    %cst_26 = arith.constant dense<0xFF800000> : vector<2x8xf32>
    %80 = vector.multi_reduction <maximumf>, %79, %cst_26 [1] : vector<2x8x8xf32> to vector<2x8xf32>
    %81 = vector.shape_cast %80 : vector<2x8xf32> to vector<2x1x8xf32>
    %82 = vector.broadcast %81 : vector<2x1x8xf32> to vector<2x8x8xf32>
    %83 = arith.subf %79, %82 : vector<2x8x8xf32>
    %84 = math.exp %83 : vector<2x8x8xf32>
    %cst_27 = arith.constant dense<0.000000e+00> : vector<2x8xf32>
    %85 = vector.multi_reduction <add>, %84, %cst_27 [1] : vector<2x8x8xf32> to vector<2x8xf32>
    %86 = vector.shape_cast %85 : vector<2x8xf32> to vector<2x1x8xf32>
    %87 = tpu.reciprocal %86 {approx = true} : vector<2x1x8xf32> -> vector<2x1x8xf32>
    %88 = vector.broadcast %87 : vector<2x1x8xf32> to vector<2x8x8xf32>
    %89 = arith.mulf %84, %88 : vector<2x8x8xf32>
    %90 = arith.truncf %89 : vector<2x8x8xf32> to vector<2x8x8xbf16>
    "tpu.trace_start"() <{level = 10 : i32, message = "bqk,bkd->bqd"}> : () -> ()
    %cst_28 = arith.constant dense<0.000000e+00> : vector<2x8x8xf32>
    %91 = tpu.matmul %90, %76, %cst_28 {dimension_numbers = #tpu.dot_dimension_numbers<[2], [1], [1], [2], [0, 0, 0, 1, 1, 2], [0], [0]>} : vector<2x8x8xbf16>, vector<2x8x8xbf16>, vector<2x8x8xf32> -> vector<2x8x8xf32>
    "tpu.trace_stop"() : () -> ()
    %92 = arith.truncf %91 : vector<2x8x8xf32> to vector<2x8x8xbf16>
    %93 = vector.shape_cast %92 : vector<2x8x8xbf16> to vector<16x8xbf16>
    %c0_29 = arith.constant 0 : index
    %c24 = arith.constant 24 : index
    %94 = vector.load %arg7[%c0_29, %c24] : memref<16x32xbf16, #tpu.memory_space<vmem>>, vector<16x8xbf16>
    tpu.vector_store %arg7[%c0_29, %c24], %93 {strides = array<i32>} : memref<16x32xbf16, #tpu.memory_space<vmem>>, vector<16x8xbf16>,
    %c0_30 = arith.constant 0 : index
    %c0_31 = arith.constant 0 : index
    %95 = vector.load %arg7[%c0_30, %c0_31] : memref<16x32xbf16, #tpu.memory_space<vmem>>, vector<16x32xbf16>
    %c0_32 = arith.constant 0 : index
    %c0_33 = arith.constant 0 : index
    %96 = vector.load %arg4[%c0_32, %c0_33] : memref<32x32xbf16, #tpu.memory_space<vmem>>, vector<32x32xbf16>
    %cst_34 = arith.constant dense<0.000000e+00> : vector<16x32xf32>
    %97 = tpu.matmul %95, %96, %cst_34 {dimension_numbers = #tpu.dot_dimension_numbers<[1], [0], [0], [1], [0, 0, 1, 1], [], []>} : vector<16x32xbf16>, vector<32x32xbf16>, vector<16x32xf32> -> vector<16x32xf32>
    %c0_35 = arith.constant 0 : index
    %c0_36 = arith.constant 0 : index
    %98 = vector.load %arg5[%c0_35, %c0_36] : memref<1x32xf32, #tpu.memory_space<vmem>>, vector<1x32xf32>
    %99 = vector.broadcast %98 : vector<1x32xf32> to vector<16x32xf32>
    %100 = arith.addf %97, %99 : vector<16x32xf32>
    %c0_37 = arith.constant 0 : index
    %c0_38 = arith.constant 0 : index
    %101 = vector.load %arg6[%c0_37, %c0_38] : memref<16x32xf32, #tpu.memory_space<vmem>>, vector<16x32xf32>
    tpu.vector_store %arg6[%c0_37, %c0_38], %100 {strides = array<i32>} : memref<16x32xf32, #tpu.memory_space<vmem>>, vector<16x32xf32>,
    return
  }
  func.func @transform_0(%arg0: i32) -> (i32, i32) {
    %c0_i32 = arith.constant 0 : i32
    %c0_i32_0 = arith.constant 0 : i32
    return %arg0, %c0_i32 : i32, i32
  }
  func.func @transform_1(%arg0: i32) -> (i32, i32) {
    %c0_i32 = arith.constant 0 : i32
    %c0_i32_0 = arith.constant 0 : i32
    %c0_i32_1 = arith.constant 0 : i32
    return %c0_i32, %c0_i32_0 : i32, i32
  }
  func.func @transform_2(%arg0: i32) -> (i32, i32) {
    %c0_i32 = arith.constant 0 : i32
    %c0_i32_0 = arith.constant 0 : i32
    %c0_i32_1 = arith.constant 0 : i32
    return %c0_i32, %c0_i32_0 : i32, i32
  }
  func.func @transform_3(%arg0: i32) -> (i32, i32) {
    %c0_i32 = arith.constant 0 : i32
    %c0_i32_0 = arith.constant 0 : i32
    %c0_i32_1 = arith.constant 0 : i32
    return %c0_i32, %c0_i32_0 : i32, i32
  }
  func.func @transform_4(%arg0: i32) -> (i32, i32) {
    %c0_i32 = arith.constant 0 : i32
    %c0_i32_0 = arith.constant 0 : i32
    %c0_i32_1 = arith.constant 0 : i32
    return %c0_i32, %c0_i32_0 : i32, i32
  }
  func.func @transform_5(%arg0: i32) -> (i32, i32) {
    %c0_i32 = arith.constant 0 : i32
    %c0_i32_0 = arith.constant 0 : i32
    return %arg0, %c0_i32 : i32, i32
  }
}

</mosaic_0001>

<llo_original>
// kernel: tpu_custom_call.1
$region0: #{tpu_custom_call.1}
  #allocation0 [shape = 'u32[]', space=smem, size = 0x4, offset = 0x4, fixed_abs, tag = 'smem constant byte address 0x4 - core index']
  #allocation1 [shape = 'u32[72,128]{1,0:T(1,128)}', space=vmem, size = 0x9000, scoped, tag = 'internal scratch']
  #allocation2 [shape = 'bf16[16,32]{1,0:T(8,128)(2,1)}', space=vmem, size = 0x1000, scoped, tag = 'scratch operand']
  %s0 = inlined_call_operand.hbm [shape: bf16[16,32], index: 0, kind: input, shape index: {}]
  %s1 = inlined_call_operand.hbm [shape: bf16[32,96], index: 1, kind: input, shape index: {}]
  %s2 = inlined_call_operand.vmem [shape: f32[1,96], index: 2, kind: input, shape index: {}]
  %s3 = inlined_call_operand.hbm [shape: bf16[32,32], index: 3, kind: input, shape index: {}]
  %s4 = inlined_call_operand.vmem [shape: f32[1,32], index: 4, kind: input, shape index: {}]
  %s5 = inlined_call_operand.hbm [shape: f32[16,32], index: 5, kind: output, shape index: {}]
  %s6 = sld [smem:[#allocation0]]
  $region42: #{tpu_custom_call.1} parent=0
    _
  %s8 = ssub.s32 1, %s6
  %s9 = scalar_select 0, %s8, %s6
  $region1: #{tpu_custom_call.1} parent=0
    #allocation3 [shape = 'u8[4096]{0}', space=vmem, size = 0x1000, scoped, tag = 'input window, operand 0, single buffered']
    #allocation4 [shape = 's32[1]{0}', space=sflag, size = 0x4, scoped, tag = 'scoped memory for tpu_custom_call.1']
    #allocation5 [shape = 's32[1]{0}', space=sflag, size = 0x4, scoped, tag = 'scoped memory for tpu_custom_call.1']
    #allocation6 [shape = 'u8[8192]{0}', space=vmem, size = 0x2000, scoped, tag = 'input window, operand 1, single buffered']
    #allocation7 [shape = 's32[1]{0}', space=sflag, size = 0x4, scoped, tag = 'scoped memory for tpu_custom_call.1']
    #allocation8 [shape = 'u8[8192]{0}', space=vmem, size = 0x2000, scoped, tag = 'input window, operand 3, single buffered']
    #allocation9 [shape = 'u8[8192]{0}', space=vmem, size = 0x2000, scoped, tag = 'output window, operand 0, single buffered']
    %10 = vsyncpa [#allocation4], 0
    %11 = vsyncpa [#allocation7], 0
    %12 = vsyncpa [#allocation5], 0
    // Predicated region
    $region2: #{tpu_custom_call.1} parent=1 // pred_check
      _
    $region3: #{tpu_custom_call.1} parent=1 // pred_check_branch
      %14 = sbr.rel (0) target = $region5
    $region4: #{tpu_custom_call.1} parent=1 // pred_region
      %16 = vsyncadd [#allocation4], 0
      %s17 = sshll.u32 %s0, 4
      %s18 = int_to_ptr.hbm [resolvable:$true] %s17
      %s19 = sshll.u32 [#allocation3], 4
      %s20 = int_to_ptr.vmem [resolvable:$true] %s19
      %25 = dma.hbm_to_vmem [thread:$0]  %s18, 128, %s20, [#allocation4], 64, 64, 4
    $region5: #{tpu_custom_call.1} parent=1 // pred_fallthru
      _
    // Predicated region
    $region6: #{tpu_custom_call.1} parent=1 // pred_check
      _
    $region7: #{tpu_custom_call.1} parent=1 // pred_check_branch
      %27 = sbr.rel (0) target = $region9
    $region8: #{tpu_custom_call.1} parent=1 // pred_region
      %29 = vsyncadd [#allocation7], 0
      %s30 = sshll.u32 %s1, 4
      %s31 = int_to_ptr.hbm [resolvable:$true] %s30
      %s32 = sshll.u32 [#allocation6], 4
      %s33 = int_to_ptr.vmem [resolvable:$true] %s32
      %38 = dma.hbm_to_vmem [thread:$0]  %s31, 256, %s33, [#allocation7], 64, 64, 4
    $region9: #{tpu_custom_call.1} parent=1 // pred_fallthru
      _
    // Predicated region
    $region10: #{tpu_custom_call.1} parent=1 // pred_check
      _
    $region11: #{tpu_custom_call.1} parent=1 // pred_check_branch
      %40 = sbr.rel (0) target = $region13
    $region12: #{tpu_custom_call.1} parent=1 // pred_region
      _
    $region13: #{tpu_custom_call.1} parent=1 // pred_fallthru
      _
    // Predicated region
    $region14: #{tpu_custom_call.1} parent=1 // pred_check
      _
    $region15: #{tpu_custom_call.1} parent=1 // pred_check_branch
      %42 = sbr.rel (0) target = $region17
    $region16: #{tpu_custom_call.1} parent=1 // pred_region
      %44 = vsyncadd [#allocation7], 0
      %s45 = sshll.u32 %s3, 4
      %s46 = int_to_ptr.hbm [resolvable:$true] %s45
      %s47 = sshll.u32 [#allocation8], 4
      %s48 = int_to_ptr.vmem [resolvable:$true] %s47
      %53 = dma.hbm_to_vmem [thread:$0]  %s46, 256, %s48, [#allocation7], 64, 64, 4
    $region17: #{tpu_custom_call.1} parent=1 // pred_fallthru
      _
    // Predicated region
    $region18: #{tpu_custom_call.1} parent=1 // pred_check
      _
    $region19: #{tpu_custom_call.1} parent=1 // pred_check_branch
      %55 = sbr.rel (0) target = $region21
    $region20: #{tpu_custom_call.1} parent=1 // pred_region
      _
    $region21: #{tpu_custom_call.1} parent=1 // pred_fallthru
      _
    // Predicated region
    $region22: #{tpu_custom_call.1} parent=1 // pred_check
      _
    $region23: #{tpu_custom_call.1} parent=1 // pred_check_branch
      %57 = sbr.rel (0) target = $region25
    $region24: #{tpu_custom_call.1} parent=1 // pred_region
      %59 = dma.done [#allocation4], 128
    $region25: #{tpu_custom_call.1} parent=1 // pred_fallthru
      _
    // Predicated region
    $region26: #{tpu_custom_call.1} parent=1 // pred_check
      _
    $region27: #{tpu_custom_call.1} parent=1 // pred_check_branch
      %61 = sbr.rel (0) target = $region29
    $region28: #{tpu_custom_call.1} parent=1 // pred_region
      %63 = dma.done [#allocation7], 256
    $region29: #{tpu_custom_call.1} parent=1 // pred_fallthru
      _
    // Predicated region
    $region30: #{tpu_custom_call.1} parent=1 // pred_check
      _
    $region31: #{tpu_custom_call.1} parent=1 // pred_check_branch
      %65 = sbr.rel (0) target = $region33
    $region32: #{tpu_custom_call.1} parent=1 // pred_region
      %67 = dma.done [#allocation7], 256
    $region33: #{tpu_custom_call.1} parent=1 // pred_fallthru
      _
    %v69 = vld [vmem:[#allocation3] sm:$0xf]
    %v70 = vld [vmem:[#allocation3 + $0x4] sm:$0xf]
    %v71 = vld [vmem:[#allocation6] sm:$0xf]
    %v72 = vld [vmem:[#allocation6 + $0x4] sm:$0xf]
    %v73 = vld [vmem:[#allocation6 + $0x8] sm:$0xf]
    %v74 = vld [vmem:[#allocation6 + $0xc] sm:$0xf]
    %v75 = vld [vmem:[%s2] sm:$0x1]
    %v77 = vperm.slane %v75, 0
    %v81 = vunpack.c.l.b16 %v69
    %v82 = vunpack.c.l.b16 %v70
    %v83 = vpack.c.b16 %v82, %v81
    %v88 = vunpack.c.l.b16 %v71
    %v89 = vunpack.c.l.b16 %v72
    %v90 = vunpack.c.l.b16 %v73
    %v91 = vunpack.c.l.b16 %v74
    %v92 = vpack.c.b16 %v89, %v88
    %v93 = vpack.c.b16 %v91, %v90
    %vm96 = vcmask 261120
    %v98 = vsel %vm96, %v83, 0
    %100 = vmatpush.bf16.msra.mxu0 0
    %101 = vmatpush.bf16.msra.mxu0 0
    %102 = vmatpush.bf16.msra.mxu0 0
    %103 = vmatpush.bf16.msra.mxu0 0
    %104 = vmatpush.bf16.msra.mxu0 0
    %105 = vmatpush.bf16.msra.mxu0 0
    %106 = vmatpush.bf16.msra.mxu0 %v93
    %107 = vmatpush.bf16.msra.mxu0 %v92
    %108 = vmatmul.bf16.gmra.mxu0 %v98
    %v109 = vpop.f32.mrf.mxu0
    %v110 = vadd.f32 %v77, %v109
    %v111 = vpop.f32.mrf.mxu0
    %v112 = vadd.f32 %v77, %v111
    %113 = vdwg.mxu0
    %v114 = vpack.c.bf16 %v110, %v110
    %v115 = vpack.c.bf16 %v112, %v112
    %v116 = vlaneseq
    %v117 = vshrl.u32 %v116, 7
    %v118 = vlaneseq
    %v119 = vand.u32 %v118, 127
    %vm120 = vcmp.gt.s32.totalorder %v119, %v117
    %v122 = vunpack.c.l.b16 %v114
    %v123 = vpack.c.b16 %v122, %v122
    %124 = vrot.lane.b32.xlu0 %v123, 96
    %v125 = vpop.permute.xlu0 %124
    %vm126 = vcmask 64512
    %v128 = vsel %vm126, %v114, 0
    %v131 = vsel %vm126, %v125, 0
    %133 = vmatpush.bf16.xpose.msra.mxu0 0
    %134 = vmatpush.bf16.xpose.msra.mxu0 0
    %135 = vmatpush.bf16.xpose.msra.mxu0 0
    %136 = vmatpush.bf16.xpose.msra.mxu0 0
    %137 = vmatpush.bf16.xpose.msra.mxu0 0
    %138 = vmatpush.bf16.xpose.msra.mxu0 0
    %139 = vmatpush.bf16.xpose.msra.mxu0 0
    %140 = vmatpush.bf16.xpose.msra.mxu0 %v131
    %141 = vmatmul.bf16.gmra.mxu0 %v128
    %v142 = vpop.f32.mrf.mxu0
    %v143 = vadd.f32 0.0, %v142
    %v144 = vpop.f32.mrf.mxu0
    %145 = vdwg.mxu0
    %v147 = vunpack.c.l.b16 %v115
    %v148 = vpack.c.b16 %v147, %v147
    %149 = vrot.lane.b32.xlu0 %v148, 96
    %v150 = vpop.permute.xlu0 %149
    %v152 = vsel %vm126, %v115, 0
    %v155 = vsel %vm126, %v150, 0
    %157 = vmatpush.bf16.xpose.msra.mxu0 0
    %158 = vmatpush.bf16.xpose.msra.mxu0 0
    %159 = vmatpush.bf16.xpose.msra.mxu0 0
    %160 = vmatpush.bf16.xpose.msra.mxu0 0
    %161 = vmatpush.bf16.xpose.msra.mxu0 0
    %162 = vmatpush.bf16.xpose.msra.mxu0 0
    %163 = vmatpush.bf16.xpose.msra.mxu0 0
    %164 = vmatpush.bf16.xpose.msra.mxu0 %v155
    %165 = vmatmul.bf16.gmra.mxu0 %v152
    %v166 = vpop.f32.mrf.mxu0
    %v167 = vadd.f32 0.0, %v166
    %v168 = vpop.f32.mrf.mxu0
    %169 = vdwg.mxu0
    %v170 = vsel %vm120, -inf, %v143
    %v171 = vsel %vm120, -inf, %v167
    %v172 = vsel %vm126, %v170, -inf
    %v173 = vrot.slane %v172, 4
    %v174 = vmax.f32 %v172, %v173
    %v175 = vrot.slane %v174, 2
    %v176 = vmax.f32 %v174, %v175
    %v177 = vrot.slane %v176, 1
    %v178 = vmax.f32 %v176, %v177
    %v179 = vsel %vm126, %v171, -inf
    %v180 = vrot.slane %v179, 4
    %v181 = vmax.f32 %v179, %v180
    %v182 = vrot.slane %v181, 2
    %v183 = vmax.f32 %v181, %v182
    %v184 = vrot.slane %v183, 1
    %v185 = vmax.f32 %v183, %v184
    %v186 = vsub.f32 %v170, %v178
    %v187 = vsub.f32 %v171, %v185
    %v188 = vmul.f32 %v186, 1.442695
    %v189 = vpow.pop %v188
    %v190 = vmul.f32 %v187, 1.442695
    %v191 = vpow.pop %v190
    %v192 = vsel %vm126, %v189, 0.0
    %v193 = vrot.slane %v192, 4
    %v194 = vadd.f32 %v192, %v193
    %v195 = vrot.slane %v194, 2
    %v196 = vadd.f32 %v194, %v195
    %v197 = vrot.slane %v196, 1
    %v198 = vadd.f32 %v196, %v197
    %v199 = vsel %vm126, %v191, 0.0
    %v200 = vrot.slane %v199, 4
    %v201 = vadd.f32 %v199, %v200
    %v202 = vrot.slane %v201, 2
    %v203 = vadd.f32 %v201, %v202
    %v204 = vrot.slane %v203, 1
    %v205 = vadd.f32 %v203, %v204
    %v206 = vrcp.pop %v198
    %v207 = vrcp.pop %v205
    %v208 = vmul.f32 %v189, %v206
    %v209 = vmul.f32 %v191, %v207
    %v210 = vpack.c.bf16 %v208, %v208
    %v211 = vpack.c.bf16 %v209, %v209
    %212 = vrot.lane.b32.xlu0 %v123, 64
    %v213 = vpop.permute.xlu0 %212
    %v215 = vsel %vm126, %v210, 0
    %vm217 = vcmask 1043456
    %v219 = vsel %vm217, %v213, 0
    %221 = vmatpush.bf16.msra.mxu0 0
    %222 = vmatpush.bf16.msra.mxu0 0
    %223 = vmatpush.bf16.msra.mxu0 0
    %224 = vmatpush.bf16.msra.mxu0 0
    %225 = vmatpush.bf16.msra.mxu0 0
    %226 = vmatpush.bf16.msra.mxu0 0
    %227 = vmatpush.bf16.msra.mxu0 0
    %228 = vmatpush.bf16.msra.mxu0 %v219
    %229 = vmatmul.bf16.gmra.mxu0 %v215
    %v230 = vpop.f32.mrf.mxu0
    %v231 = vadd.f32 0.0, %v230
    %v232 = vpop.f32.mrf.mxu0
    %233 = vdwg.mxu0
    %234 = vrot.lane.b32.xlu0 %v148, 64
    %v235 = vpop.permute.xlu0 %234
    %v237 = vsel %vm126, %v211, 0
    %v240 = vsel %vm217, %v235, 0
    %242 = vmatpush.bf16.msra.mxu0 0
    %243 = vmatpush.bf16.msra.mxu0 0
    %244 = vmatpush.bf16.msra.mxu0 0
    %245 = vmatpush.bf16.msra.mxu0 0
    %246 = vmatpush.bf16.msra.mxu0 0
    %247 = vmatpush.bf16.msra.mxu0 0
    %248 = vmatpush.bf16.msra.mxu0 0
    %249 = vmatpush.bf16.msra.mxu0 %v240
    %250 = vmatmul.bf16.gmra.mxu0 %v237
    %v251 = vpop.f32.mrf.mxu0
    %v252 = vadd.f32 0.0, %v251
    %v253 = vpop.f32.mrf.mxu0
    %254 = vdwg.mxu0
    %v255 = vpack.c.bf16 %v231, %v231
    %v256 = vpack.c.bf16 %v252, %v252
    %vm257 = vcmask 60416
    %258 = vst.msk [vmem:[#allocation2] sm:$0xf] %vm257, %v255
    %259 = vst.msk [vmem:[#allocation2 + $0x4] sm:$0xf] %vm257, %v256
    %260 = vrot.lane.b32.xlu0 %v123, 120
    %v261 = vpop.permute.xlu0 %260
    %262 = vrot.lane.b32.xlu0 %v123, 88
    %v263 = vpop.permute.xlu0 %262
    %v265 = vsel %vm126, %v261, 0
    %v268 = vsel %vm126, %v263, 0
    %270 = vmatpush.bf16.xpose.msra.mxu0 0
    %271 = vmatpush.bf16.xpose.msra.mxu0 0
    %272 = vmatpush.bf16.xpose.msra.mxu0 0
    %273 = vmatpush.bf16.xpose.msra.mxu0 0
    %274 = vmatpush.bf16.xpose.msra.mxu0 0
    %275 = vmatpush.bf16.xpose.msra.mxu0 0
    %276 = vmatpush.bf16.xpose.msra.mxu0 0
    %277 = vmatpush.bf16.xpose.msra.mxu0 %v268
    %278 = vmatmul.bf16.gmra.mxu0 %v265
    %v279 = vpop.f32.mrf.mxu0
    %v280 = vadd.f32 0.0, %v279
    %v281 = vpop.f32.mrf.mxu0
    %282 = vdwg.mxu0
    %283 = vrot.lane.b32.xlu0 %v148, 120
    %v284 = vpop.permute.xlu0 %283
    %285 = vrot.lane.b32.xlu0 %v148, 88
    %v286 = vpop.permute.xlu0 %285
    %v288 = vsel %vm126, %v284, 0
    %v291 = vsel %vm126, %v286, 0
    %293 = vmatpush.bf16.xpose.msra.mxu0 0
    %294 = vmatpush.bf16.xpose.msra.mxu0 0
    %295 = vmatpush.bf16.xpose.msra.mxu0 0
    %296 = vmatpush.bf16.xpose.msra.mxu0 0
    %297 = vmatpush.bf16.xpose.msra.mxu0 0
    %298 = vmatpush.bf16.xpose.msra.mxu0 0
    %299 = vmatpush.bf16.xpose.msra.mxu0 0
    %300 = vmatpush.bf16.xpose.msra.mxu0 %v291
    %301 = vmatmul.bf16.gmra.mxu0 %v288
    %v302 = vpop.f32.mrf.mxu0
    %v303 = vadd.f32 0.0, %v302
    %v304 = vpop.f32.mrf.mxu0
    %305 = vdwg.mxu0
    %v306 = vsel %vm120, -inf, %v280
    %v307 = vsel %vm120, -inf, %v303
    %v308 = vsel %vm126, %v306, -inf
    %v309 = vrot.slane %v308, 4
    %v310 = vmax.f32 %v308, %v309
    %v311 = vrot.slane %v310, 2
    %v312 = vmax.f32 %v310, %v311
    %v313 = vrot.slane %v312, 1
    %v314 = vmax.f32 %v312, %v313
    %v315 = vsel %vm126, %v307, -inf
    %v316 = vrot.slane %v315, 4
    %v317 = vmax.f32 %v315, %v316
    %v318 = vrot.slane %v317, 2
    %v319 = vmax.f32 %v317, %v318
    %v320 = vrot.slane %v319, 1
    %v321 = vmax.f32 %v319, %v320
    %v322 = vsub.f32 %v306, %v314
    %v323 = vsub.f32 %v307, %v321
    %v324 = vmul.f32 %v322, 1.442695
    %v325 = vpow.pop %v324
    %v326 = vmul.f32 %v323, 1.442695
    %v327 = vpow.pop %v326
    %v328 = vsel %vm126, %v325, 0.0
    %v329 = vrot.slane %v328, 4
    %v330 = vadd.f32 %v328, %v329
    %v331 = vrot.slane %v330, 2
    %v332 = vadd.f32 %v330, %v331
    %v333 = vrot.slane %v332, 1
    %v334 = vadd.f32 %v332, %v333
    %v335 = vsel %vm126, %v327, 0.0
    %v336 = vrot.slane %v335, 4
    %v337 = vadd.f32 %v335, %v336
    %v338 = vrot.slane %v337, 2
    %v339 = vadd.f32 %v337, %v338
    %v340 = vrot.slane %v339, 1
    %v341 = vadd.f32 %v339, %v340
    %v342 = vrcp.pop %v334
    %v343 = vrcp.pop %v341
    %v344 = vmul.f32 %v325, %v342
    %v345 = vmul.f32 %v327, %v343
    %v346 = vpack.c.bf16 %v344, %v344
    %v347 = vpack.c.bf16 %v345, %v345
    %348 = vrot.lane.b32.xlu0 %v123, 56
    %v349 = vpop.permute.xlu0 %348
    %v351 = vsel %vm126, %v346, 0
    %v354 = vsel %vm217, %v349, 0
    %356 = vmatpush.bf16.msra.mxu0 0
    %357 = vmatpush.bf16.msra.mxu0 0
    %358 = vmatpush.bf16.msra.mxu0 0
    %359 = vmatpush.bf16.msra.mxu0 0
    %360 = vmatpush.bf16.msra.mxu0 0
    %361 = vmatpush.bf16.msra.mxu0 0
    %362 = vmatpush.bf16.msra.mxu0 0
    %363 = vmatpush.bf16.msra.mxu0 %v354
    %364 = vmatmul.bf16.gmra.mxu0 %v351
    %v365 = vpop.f32.mrf.mxu0
    %v366 = vadd.f32 0.0, %v365
    %v367 = vpop.f32.mrf.mxu0
    %368 = vdwg.mxu0
    %369 = vrot.lane.b32.xlu0 %v148, 56
    %v370 = vpop.permute.xlu0 %369
    %v372 = vsel %vm126, %v347, 0
    %v375 = vsel %vm217, %v370, 0
    %377 = vmatpush.bf16.msra.mxu0 0
    %378 = vmatpush.bf16.msra.mxu0 0
    %379 = vmatpush.bf16.msra.mxu0 0
    %380 = vmatpush.bf16.msra.mxu0 0
    %381 = vmatpush.bf16.msra.mxu0 0
    %382 = vmatpush.bf16.msra.mxu0 0
    %383 = vmatpush.bf16.msra.mxu0 0
    %384 = vmatpush.bf16.msra.mxu0 %v375
    %385 = vmatmul.bf16.gmra.mxu0 %v372
    %v386 = vpop.f32.mrf.mxu0
    %v387 = vadd.f32 0.0, %v386
    %v388 = vpop.f32.mrf.mxu0
    %389 = vdwg.mxu0
    %v390 = vpack.c.bf16 %v366, %v366
    %v391 = vpack.c.bf16 %v387, %v387
    %394 = vrot.lane.b32.xlu0 %v390, 8
    %v395 = vpop.permute.xlu0 %394
    %396 = vrot.lane.b32.xlu0 %v391, 8
    %v397 = vpop.permute.xlu0 %396
    %vm400 = vcmask 126016
    %401 = vst.msk [vmem:[#allocation2] sm:$0xf] %vm400, %v395
    %402 = vst.msk [vmem:[#allocation2 + $0x4] sm:$0xf] %vm400, %v397
    %403 = vrot.lane.b32.xlu0 %v123, 112
    %v404 = vpop.permute.xlu0 %403
    %405 = vrot.lane.b32.xlu0 %v123, 80
    %v406 = vpop.permute.xlu0 %405
    %v408 = vsel %vm126, %v404, 0
    %v411 = vsel %vm126, %v406, 0
    %413 = vmatpush.bf16.xpose.msra.mxu0 0
    %414 = vmatpush.bf16.xpose.msra.mxu0 0
    %415 = vmatpush.bf16.xpose.msra.mxu0 0
    %416 = vmatpush.bf16.xpose.msra.mxu0 0
    %417 = vmatpush.bf16.xpose.msra.mxu0 0
    %418 = vmatpush.bf16.xpose.msra.mxu0 0
    %419 = vmatpush.bf16.xpose.msra.mxu0 0
    %420 = vmatpush.bf16.xpose.msra.mxu0 %v411
    %421 = vmatmul.bf16.gmra.mxu0 %v408
    %v422 = vpop.f32.mrf.mxu0
    %v423 = vadd.f32 0.0, %v422
    %v424 = vpop.f32.mrf.mxu0
    %425 = vdwg.mxu0
    %426 = vrot.lane.b32.xlu0 %v148, 112
    %v427 = vpop.permute.xlu0 %426
    %428 = vrot.lane.b32.xlu0 %v148, 80
    %v429 = vpop.permute.xlu0 %428
    %v431 = vsel %vm126, %v427, 0
    %v434 = vsel %vm126, %v429, 0
    %436 = vmatpush.bf16.xpose.msra.mxu0 0
    %437 = vmatpush.bf16.xpose.msra.mxu0 0
    %438 = vmatpush.bf16.xpose.msra.mxu0 0
    %439 = vmatpush.bf16.xpose.msra.mxu0 0
    %440 = vmatpush.bf16.xpose.msra.mxu0 0
    %441 = vmatpush.bf16.xpose.msra.mxu0 0
    %442 = vmatpush.bf16.xpose.msra.mxu0 0
    %443 = vmatpush.bf16.xpose.msra.mxu0 %v434
    %444 = vmatmul.bf16.gmra.mxu0 %v431
    %v445 = vpop.f32.mrf.mxu0
    %v446 = vadd.f32 0.0, %v445
    %v447 = vpop.f32.mrf.mxu0
    %448 = vdwg.mxu0
    %v449 = vsel %vm120, -inf, %v423
    %v450 = vsel %vm120, -inf, %v446
    %v451 = vsel %vm126, %v449, -inf
    %v452 = vrot.slane %v451, 4
    %v453 = vmax.f32 %v451, %v452
    %v454 = vrot.slane %v453, 2
    %v455 = vmax.f32 %v453, %v454
    %v456 = vrot.slane %v455, 1
    %v457 = vmax.f32 %v455, %v456
    %v458 = vsel %vm126, %v450, -inf
    %v459 = vrot.slane %v458, 4
    %v460 = vmax.f32 %v458, %v459
    %v461 = vrot.slane %v460, 2
    %v462 = vmax.f32 %v460, %v461
    %v463 = vrot.slane %v462, 1
    %v464 = vmax.f32 %v462, %v463
    %v465 = vsub.f32 %v449, %v457
    %v466 = vsub.f32 %v450, %v464
    %v467 = vmul.f32 %v465, 1.442695
    %v468 = vpow.pop %v467
    %v469 = vmul.f32 %v466, 1.442695
    %v470 = vpow.pop %v469
    %v471 = vsel %vm126, %v468, 0.0
    %v472 = vrot.slane %v471, 4
    %v473 = vadd.f32 %v471, %v472
    %v474 = vrot.slane %v473, 2
    %v475 = vadd.f32 %v473, %v474
    %v476 = vrot.slane %v475, 1
    %v477 = vadd.f32 %v475, %v476
    %v478 = vsel %vm126, %v470, 0.0
    %v479 = vrot.slane %v478, 4
    %v480 = vadd.f32 %v478, %v479
    %v481 = vrot.slane %v480, 2
    %v482 = vadd.f32 %v480, %v481
    %v483 = vrot.slane %v482, 1
    %v484 = vadd.f32 %v482, %v483
    %v485 = vrcp.pop %v477
    %v486 = vrcp.pop %v484
    %v487 = vmul.f32 %v468, %v485
    %v488 = vmul.f32 %v470, %v486
    %v489 = vpack.c.bf16 %v487, %v487
    %v490 = vpack.c.bf16 %v488, %v488
    %491 = vrot.lane.b32.xlu0 %v123, 48
    %v492 = vpop.permute.xlu0 %491
    %v494 = vsel %vm126, %v489, 0
    %v497 = vsel %vm217, %v492, 0
    %499 = vmatpush.bf16.msra.mxu0 0
    %500 = vmatpush.bf16.msra.mxu0 0
    %501 = vmatpush.bf16.msra.mxu0 0
    %502 = vmatpush.bf16.msra.mxu0 0
    %503 = vmatpush.bf16.msra.mxu0 0
    %504 = vmatpush.bf16.msra.mxu0 0
    %505 = vmatpush.bf16.msra.mxu0 0
    %506 = vmatpush.bf16.msra.mxu0 %v497
    %507 = vmatmul.bf16.gmra.mxu0 %v494
    %v508 = vpop.f32.mrf.mxu0
    %v509 = vadd.f32 0.0, %v508
    %v510 = vpop.f32.mrf.mxu0
    %511 = vdwg.mxu0
    %512 = vrot.lane.b32.xlu0 %v148, 48
    %v513 = vpop.permute.xlu0 %512
    %v515 = vsel %vm126, %v490, 0
    %v518 = vsel %vm217, %v513, 0
    %520 = vmatpush.bf16.msra.mxu0 0
    %521 = vmatpush.bf16.msra.mxu0 0
    %522 = vmatpush.bf16.msra.mxu0 0
    %523 = vmatpush.bf16.msra.mxu0 0
    %524 = vmatpush.bf16.msra.mxu0 0
    %525 = vmatpush.bf16.msra.mxu0 0
    %526 = vmatpush.bf16.msra.mxu0 0
    %527 = vmatpush.bf16.msra.mxu0 %v518
    %528 = vmatmul.bf16.gmra.mxu0 %v515
    %v529 = vpop.f32.mrf.mxu0
    %v530 = vadd.f32 0.0, %v529
    %v531 = vpop.f32.mrf.mxu0
    %532 = vdwg.mxu0
    %v533 = vpack.c.bf16 %v509, %v509
    %v534 = vpack.c.bf16 %v530, %v530
    %537 = vrot.lane.b32.xlu0 %v533, 16
    %v538 = vpop.permute.xlu0 %537
    %539 = vrot.lane.b32.xlu0 %v534, 16
    %v540 = vpop.permute.xlu0 %539
    %vm543 = vcmask 191616
    %544 = vst.msk [vmem:[#allocation2] sm:$0xf] %vm543, %v538
    %545 = vst.msk [vmem:[#allocation2 + $0x4] sm:$0xf] %vm543, %v540
    %546 = vrot.lane.b32.xlu0 %v123, 104
    %v547 = vpop.permute.xlu0 %546
    %548 = vrot.lane.b32.xlu0 %v123, 72
    %v549 = vpop.permute.xlu0 %548
    %v551 = vsel %vm126, %v547, 0
    %v554 = vsel %vm126, %v549, 0
    %556 = vmatpush.bf16.xpose.msra.mxu0 0
    %557 = vmatpush.bf16.xpose.msra.mxu0 0
    %558 = vmatpush.bf16.xpose.msra.mxu0 0
    %559 = vmatpush.bf16.xpose.msra.mxu0 0
    %560 = vmatpush.bf16.xpose.msra.mxu0 0
    %561 = vmatpush.bf16.xpose.msra.mxu0 0
    %562 = vmatpush.bf16.xpose.msra.mxu0 0
    %563 = vmatpush.bf16.xpose.msra.mxu0 %v554
    %564 = vmatmul.bf16.gmra.mxu0 %v551
    %v565 = vpop.f32.mrf.mxu0
    %v566 = vadd.f32 0.0, %v565
    %v567 = vpop.f32.mrf.mxu0
    %568 = vdwg.mxu0
    %569 = vrot.lane.b32.xlu0 %v148, 104
    %v570 = vpop.permute.xlu0 %569
    %571 = vrot.lane.b32.xlu0 %v148, 72
    %v572 = vpop.permute.xlu0 %571
    %v574 = vsel %vm126, %v570, 0
    %v577 = vsel %vm126, %v572, 0
    %579 = vmatpush.bf16.xpose.msra.mxu0 0
    %580 = vmatpush.bf16.xpose.msra.mxu0 0
    %581 = vmatpush.bf16.xpose.msra.mxu0 0
    %582 = vmatpush.bf16.xpose.msra.mxu0 0
    %583 = vmatpush.bf16.xpose.msra.mxu0 0
    %584 = vmatpush.bf16.xpose.msra.mxu0 0
    %585 = vmatpush.bf16.xpose.msra.mxu0 0
    %586 = vmatpush.bf16.xpose.msra.mxu0 %v577
    %587 = vmatmul.bf16.gmra.mxu0 %v574
    %v588 = vpop.f32.mrf.mxu0
    %v589 = vadd.f32 0.0, %v588
    %v590 = vpop.f32.mrf.mxu0
    %591 = vdwg.mxu0
    %v592 = vsel %vm120, -inf, %v566
    %v593 = vsel %vm120, -inf, %v589
    %v594 = vsel %vm126, %v592, -inf
    %v595 = vrot.slane %v594, 4
    %v596 = vmax.f32 %v594, %v595
    %v597 = vrot.slane %v596, 2
    %v598 = vmax.f32 %v596, %v597
    %v599 = vrot.slane %v598, 1
    %v600 = vmax.f32 %v598, %v599
    %v601 = vsel %vm126, %v593, -inf
    %v602 = vrot.slane %v601, 4
    %v603 = vmax.f32 %v601, %v602
    %v604 = vrot.slane %v603, 2
    %v605 = vmax.f32 %v603, %v604
    %v606 = vrot.slane %v605, 1
    %v607 = vmax.f32 %v605, %v606
    %v608 = vsub.f32 %v592, %v600
    %v609 = vsub.f32 %v593, %v607
    %v610 = vmul.f32 %v608, 1.442695
    %v611 = vpow.pop %v610
    %v612 = vmul.f32 %v609, 1.442695
    %v613 = vpow.pop %v612
    %v614 = vsel %vm126, %v611, 0.0
    %v615 = vrot.slane %v614, 4
    %v616 = vadd.f32 %v614, %v615
    %v617 = vrot.slane %v616, 2
    %v618 = vadd.f32 %v616, %v617
    %v619 = vrot.slane %v618, 1
    %v620 = vadd.f32 %v618, %v619
    %v621 = vsel %vm126, %v613, 0.0
    %v622 = vrot.slane %v621, 4
    %v623 = vadd.f32 %v621, %v622
    %v624 = vrot.slane %v623, 2
    %v625 = vadd.f32 %v623, %v624
    %v626 = vrot.slane %v625, 1
    %v627 = vadd.f32 %v625, %v626
    %v628 = vrcp.pop %v620
    %v629 = vrcp.pop %v627
    %v630 = vmul.f32 %v611, %v628
    %v631 = vmul.f32 %v613, %v629
    %v632 = vpack.c.bf16 %v630, %v630
    %v633 = vpack.c.bf16 %v631, %v631
    %634 = vrot.lane.b32.xlu0 %v123, 40
    %v635 = vpop.permute.xlu0 %634
    %v637 = vsel %vm126, %v632, 0
    %v640 = vsel %vm217, %v635, 0
    %642 = vmatpush.bf16.msra.mxu0 0
    %643 = vmatpush.bf16.msra.mxu0 0
    %644 = vmatpush.bf16.msra.mxu0 0
    %645 = vmatpush.bf16.msra.mxu0 0
    %646 = vmatpush.bf16.msra.mxu0 0
    %647 = vmatpush.bf16.msra.mxu0 0
    %648 = vmatpush.bf16.msra.mxu0 0
    %649 = vmatpush.bf16.msra.mxu0 %v640
    %650 = vmatmul.bf16.gmra.mxu0 %v637
    %v651 = vpop.f32.mrf.mxu0
    %v652 = vadd.f32 0.0, %v651
    %v653 = vpop.f32.mrf.mxu0
    %654 = vdwg.mxu0
    %655 = vrot.lane.b32.xlu0 %v148, 40
    %v656 = vpop.permute.xlu0 %655
    %v658 = vsel %vm126, %v633, 0
    %v661 = vsel %vm217, %v656, 0
    %663 = vmatpush.bf16.msra.mxu0 0
    %664 = vmatpush.bf16.msra.mxu0 0
    %665 = vmatpush.bf16.msra.mxu0 0
    %666 = vmatpush.bf16.msra.mxu0 0
    %667 = vmatpush.bf16.msra.mxu0 0
    %668 = vmatpush.bf16.msra.mxu0 0
    %669 = vmatpush.bf16.msra.mxu0 0
    %670 = vmatpush.bf16.msra.mxu0 %v661
    %671 = vmatmul.bf16.gmra.mxu0 %v658
    %v672 = vpop.f32.mrf.mxu0
    %v673 = vadd.f32 0.0, %v672
    %v674 = vpop.f32.mrf.mxu0
    %675 = vdwg.mxu0
    %v676 = vpack.c.bf16 %v652, %v652
    %v677 = vpack.c.bf16 %v673, %v673
    %680 = vrot.lane.b32.xlu0 %v676, 24
    %v681 = vpop.permute.xlu0 %680
    %682 = vrot.lane.b32.xlu0 %v677, 24
    %v683 = vpop.permute.xlu0 %682
    %vm686 = vcmask 257216
    %687 = vst.msk [vmem:[#allocation2] sm:$0xf] %vm686, %v681
    %688 = vst.msk [vmem:[#allocation2 + $0x4] sm:$0xf] %vm686, %v683
    %v689 = vld [vmem:[#allocation2] sm:$0xf]
    %v690 = vld [vmem:[#allocation2 + $0x4] sm:$0xf]
    %v691 = vld [vmem:[#allocation8] sm:$0xf]
    %v692 = vld [vmem:[#allocation8 + $0x4] sm:$0xf]
    %v693 = vld [vmem:[#allocation8 + $0x8] sm:$0xf]
    %v694 = vld [vmem:[#allocation8 + $0xc] sm:$0xf]
    %v695 = vld [vmem:[%s4] sm:$0x1]
    %v697 = vperm.slane %v695, 0
    %v701 = vunpack.c.l.b16 %v689
    %v702 = vunpack.c.l.b16 %v690
    %v703 = vpack.c.b16 %v702, %v701
    %v708 = vunpack.c.l.b16 %v691
    %v709 = vunpack.c.l.b16 %v692
    %v710 = vunpack.c.l.b16 %v693
    %v711 = vunpack.c.l.b16 %v694
    %v712 = vpack.c.b16 %v709, %v708
    %v713 = vpack.c.b16 %v711, %v710
    %v717 = vsel %vm96, %v703, 0
    %719 = vmatpush.bf16.msra.mxu0 0
    %720 = vmatpush.bf16.msra.mxu0 0
    %721 = vmatpush.bf16.msra.mxu0 0
    %722 = vmatpush.bf16.msra.mxu0 0
    %723 = vmatpush.bf16.msra.mxu0 0
    %724 = vmatpush.bf16.msra.mxu0 0
    %725 = vmatpush.bf16.msra.mxu0 %v713
    %726 = vmatpush.bf16.msra.mxu0 %v712
    %727 = vmatmul.bf16.gmra.mxu0 %v717
    %v728 = vpop.f32.mrf.mxu0
    %v729 = vadd.f32 %v697, %v728
    %v730 = vpop.f32.mrf.mxu0
    %v731 = vadd.f32 %v697, %v730
    %732 = vdwg.mxu0
    %733 = vst.msk [vmem:[#allocation9] sm:$0xff] %vm96, %v729
    %734 = vst.msk [vmem:[#allocation9 + $0x8] sm:$0xff] %vm96, %v731
    // Predicated region
    $region34: #{tpu_custom_call.1} parent=1 // pred_check
      _
    $region35: #{tpu_custom_call.1} parent=1 // pred_check_branch
      %736 = sbr.rel (0) target = $region37
    $region36: #{tpu_custom_call.1} parent=1 // pred_region
      %738 = vsyncadd [#allocation5], 0
      %s739 = sshll.u32 [#allocation9], 4
      %s740 = int_to_ptr.vmem [resolvable:$true] %s739
      %s741 = sshll.u32 %s5, 4
      %s742 = int_to_ptr.hbm [resolvable:$true] %s741
      %747 = dma.vmem_to_hbm [thread:$0]  %s740, 256, %s742, [#allocation5], 128, 128, 8
    $region37: #{tpu_custom_call.1} parent=1 // pred_fallthru
      _
    // Predicated region
    $region38: #{tpu_custom_call.1} parent=1 // pred_check
      _
    $region39: #{tpu_custom_call.1} parent=1 // pred_check_branch
      %749 = sbr.rel (0) target = $region41
    $region40: #{tpu_custom_call.1} parent=1 // pred_region
      %751 = dma.done [#allocation5], 256
    $region41: #{tpu_custom_call.1} parent=1 // pred_fallthru
      _
    %752 = vsyncpa [#allocation4], 1
    %753 = vsyncpa [#allocation7], 1
    %754 = vsyncpa [#allocation5], 1

// kernel: tpu_custom_call.1
$region0: #{tpu_custom_call.1}
  #allocation0 [shape = 'u32[]', space=smem, size = 0x4, offset = 0x4, fixed_abs, tag = 'smem constant byte address 0x4 - core index']
  #allocation1 [shape = 'u32[72,128]{1,0:T(1,128)}', space=vmem, size = 0x9000, scoped, tag = 'internal scratch']
  #allocation2 [shape = 'bf16[16,32]{1,0:T(8,128)(2,1)}', space=vmem, size = 0x1000, scoped, tag = 'scratch operand']
  %s0 = inlined_call_operand.hbm [shape: bf16[16,32], index: 0, kind: input, shape index: {}]
  %s1 = inlined_call_operand.hbm [shape: bf16[32,96], index: 1, kind: input, shape index: {}]
  %s2 = inlined_call_operand.vmem [shape: f32[1,96], index: 2, kind: input, shape index: {}]
  %s3 = inlined_call_operand.hbm [shape: bf16[32,32], index: 3, kind: input, shape index: {}]
  %s4 = inlined_call_operand.vmem [shape: f32[1,32], index: 4, kind: input, shape index: {}]
  %s5 = inlined_call_operand.hbm [shape: f32[16,32], index: 5, kind: output, shape index: {}]
  %s6 = sld [smem:[#allocation0]]
  $region42: #{tpu_custom_call.1} parent=0
    _
  %s8 = ssub.s32 1, %s6
  %s9 = scalar_select 0, %s8, %s6
  $region1: #{tpu_custom_call.1} parent=0
    #allocation3 [shape = 'u8[4096]{0}', space=vmem, size = 0x1000, scoped, tag = 'input window, operand 0, single buffered']
    #allocation4 [shape = 's32[1]{0}', space=sflag, size = 0x4, scoped, tag = 'scoped memory for tpu_custom_call.1']
    #allocation5 [shape = 's32[1]{0}', space=sflag, size = 0x4, scoped, tag = 'scoped memory for tpu_custom_call.1']
    #allocation6 [shape = 'u8[8192]{0}', space=vmem, size = 0x2000, scoped, tag = 'input window, operand 1, single buffered']
    #allocation7 [shape = 's32[1]{0}', space=sflag, size = 0x4, scoped, tag = 'scoped memory for tpu_custom_call.1']
    #allocation8 [shape = 'u8[8192]{0}', space=vmem, size = 0x2000, scoped, tag = 'input window, operand 3, single buffered']
    #allocation9 [shape = 'u8[8192]{0}', space=vmem, size = 0x2000, scoped, tag = 'output window, operand 0, single buffered']
    %10 = vsyncpa [#allocation4], 0
    %11 = vsyncpa [#allocation7], 0
    %12 = vsyncpa [#allocation5], 0
    // Predicated region
    $region2: #{tpu_custom_call.1} parent=1 // pred_check
      _
    $region3: #{tpu_custom_call.1} parent=1 // pred_check_branch
      %14 = sbr.rel (0) target = $region5
    $region4: #{tpu_custom_call.1} parent=1 // pred_region
      %16 = vsyncadd [#allocation4], 0
      %s17 = sshll.u32 %s0, 4
      %s18 = int_to_ptr.hbm [resolvable:$true] %s17
      %s19 = sshll.u32 [#allocation3], 4
      %s20 = int_to_ptr.vmem [resolvable:$true] %s19
      %25 = dma.hbm_to_vmem [thread:$0]  %s18, 128, %s20, [#allocation4], 64, 64, 4
    $region5: #{tpu_custom_call.1} parent=1 // pred_fallthru
      _
    // Predicated region
    $region6: #{tpu_custom_call.1} parent=1 // pred_check
      _
    $region7: #{tpu_custom_call.1} parent=1 // pred_check_branch
      %27 = sbr.rel (0) target = $region9
    $region8: #{tpu_custom_call.1} parent=1 // pred_region
      %29 = vsyncadd [#allocation7], 0
      %s30 = sshll.u32 %s1, 4
      %s31 = int_to_ptr.hbm [resolvable:$true] %s30
      %s32 = sshll.u32 [#allocation6], 4
      %s33 = int_to_ptr.vmem [resolvable:$true] %s32
      %38 = dma.hbm_to_vmem [thread:$0]  %s31, 256, %s33, [#allocation7], 64, 64, 4
    $region9: #{tpu_custom_call.1} parent=1 // pred_fallthru
      _
    // Predicated region
    $region10: #{tpu_custom_call.1} parent=1 // pred_check
      _
    $region11: #{tpu_custom_call.1} parent=1 // pred_check_branch
      %40 = sbr.rel (0) target = $region13
    $region12: #{tpu_custom_call.1} parent=1 // pred_region
      _
    $region13: #{tpu_custom_call.1} parent=1 // pred_fallthru
      _
    // Predicated region
    $region14: #{tpu_custom_call.1} parent=1 // pred_check
      _
    $region15: #{tpu_custom_call.1} parent=1 // pred_check_branch
      %42 = sbr.rel (0) target = $region17
    $region16: #{tpu_custom_call.1} parent=1 // pred_region
      %44 = vsyncadd [#allocation7], 0
      %s45 = sshll.u32 %s3, 4
      %s46 = int_to_ptr.hbm [resolvable:$true] %s45
      %s47 = sshll.u32 [#allocation8], 4
      %s48 = int_to_ptr.vmem [resolvable:$true] %s47
      %53 = dma.hbm_to_vmem [thread:$0]  %s46, 256, %s48, [#allocation7], 64, 64, 4
    $region17: #{tpu_custom_call.1} parent=1 // pred_fallthru
      _
    // Predicated region
    $region18: #{tpu_custom_call.1} parent=1 // pred_check
      _
    $region19: #{tpu_custom_call.1} parent=1 // pred_check_branch
      %55 = sbr.rel (0) target = $region21
    $region20: #{tpu_custom_call.1} parent=1 // pred_region
      _
    $region21: #{tpu_custom_call.1} parent=1 // pred_fallthru
      _
    // Predicated region
    $region22: #{tpu_custom_call.1} parent=1 // pred_check
      _
    $region23: #{tpu_custom_call.1} parent=1 // pred_check_branch
      %57 = sbr.rel (0) target = $region25
    $region24: #{tpu_custom_call.1} parent=1 // pred_region
      %59 = dma.done [#allocation4], 128
    $region25: #{tpu_custom_call.1} parent=1 // pred_fallthru
      _
    // Predicated region
    $region26: #{tpu_custom_call.1} parent=1 // pred_check
      _
    $region27: #{tpu_custom_call.1} parent=1 // pred_check_branch
      %61 = sbr.rel (0) target = $region29
    $region28: #{tpu_custom_call.1} parent=1 // pred_region
      %63 = dma.done [#allocation7], 256
    $region29: #{tpu_custom_call.1} parent=1 // pred_fallthru
      _
    // Predicated region
    $region30: #{tpu_custom_call.1} parent=1 // pred_check
      _
    $region31: #{tpu_custom_call.1} parent=1 // pred_check_branch
      %65 = sbr.rel (0) target = $region33
    $region32: #{tpu_custom_call.1} parent=1 // pred_region
      %67 = dma.done [#allocation7], 256
    $region33: #{tpu_custom_call.1} parent=1 // pred_fallthru
      _
    %v69 = vld [vmem:[#allocation3] sm:$0xf]
    %v70 = vld [vmem:[#allocation3 + $0x4] sm:$0xf]
    %v71 = vld [vmem:[#allocation6] sm:$0xf]
    %v72 = vld [vmem:[#allocation6 + $0x4] sm:$0xf]
    %v73 = vld [vmem:[#allocation6 + $0x8] sm:$0xf]
    %v74 = vld [vmem:[#allocation6 + $0xc] sm:$0xf]
    %v75 = vld [vmem:[%s2] sm:$0x1]
    %v77 = vperm.slane %v75, 0
    %v81 = vunpack.c.l.b16 %v69
    %v82 = vunpack.c.l.b16 %v70
    %v83 = vpack.c.b16 %v82, %v81
    %v88 = vunpack.c.l.b16 %v71
    %v89 = vunpack.c.l.b16 %v72
    %v90 = vunpack.c.l.b16 %v73
    %v91 = vunpack.c.l.b16 %v74
    %v92 = vpack.c.b16 %v89, %v88
    %v93 = vpack.c.b16 %v91, %v90
    %vm96 = vcmask 261120
    %v98 = vsel %vm96, %v83, 0
    %100 = vmatpush.bf16.msra.mxu0 0
    %101 = vmatpush.bf16.msra.mxu0 0
    %102 = vmatpush.bf16.msra.mxu0 0
    %103 = vmatpush.bf16.msra.mxu0 0
    %104 = vmatpush.bf16.msra.mxu0 0
    %105 = vmatpush.bf16.msra.mxu0 0
    %106 = vmatpush.bf16.msra.mxu0 %v93
    %107 = vmatpush.bf16.msra.mxu0 %v92
    %108 = vmatmul.bf16.gmra.mxu0 %v98
    %v109 = vpop.f32.mrf.mxu0
    %v110 = vadd.f32 %v77, %v109
    %v111 = vpop.f32.mrf.mxu0
    %v112 = vadd.f32 %v77, %v111
    %113 = vdwg.mxu0
    %v114 = vpack.c.bf16 %v110, %v110
    %v115 = vpack.c.bf16 %v112, %v112
    %v116 = vlaneseq
    %v117 = vshrl.u32 %v116, 7
    %v118 = vlaneseq
    %v119 = vand.u32 %v118, 127
    %vm120 = vcmp.gt.s32.totalorder %v119, %v117
    %v122 = vunpack.c.l.b16 %v114
    %v123 = vpack.c.b16 %v122, %v122
    %124 = vrot.lane.b32.xlu0 %v123, 96
    %v125 = vpop.permute.xlu0 %124
    %vm126 = vcmask 64512
    %v128 = vsel %vm126, %v114, 0
    %v131 = vsel %vm126, %v125, 0
    %133 = vmatpush.bf16.xpose.msra.mxu0 0
    %134 = vmatpush.bf16.xpose.msra.mxu0 0
    %135 = vmatpush.bf16.xpose.msra.mxu0 0
    %136 = vmatpush.bf16.xpose.msra.mxu0 0
    %137 = vmatpush.bf16.xpose.msra.mxu0 0
    %138 = vmatpush.bf16.xpose.msra.mxu0 0
    %139 = vmatpush.bf16.xpose.msra.mxu0 0
    %140 = vmatpush.bf16.xpose.msra.mxu0 %v131
    %141 = vmatmul.bf16.gmra.mxu0 %v128
    %v142 = vpop.f32.mrf.mxu0
    %v143 = vadd.f32 0.0, %v142
    %v144 = vpop.f32.mrf.mxu0
    %145 = vdwg.mxu0
    %v147 = vunpack.c.l.b16 %v115
    %v148 = vpack.c.b16 %v147, %v147
    %149 = vrot.lane.b32.xlu0 %v148, 96
    %v150 = vpop.permute.xlu0 %149
    %v152 = vsel %vm126, %v115, 0
    %v155 = vsel %vm126, %v150, 0
    %157 = vmatpush.bf16.xpose.msra.mxu0 0
    %158 = vmatpush.bf16.xpose.msra.mxu0 0
    %159 = vmatpush.bf16.xpose.msra.mxu0 0
    %160 = vmatpush.bf16.xpose.msra.mxu0 0
    %161 = vmatpush.bf16.xpose.msra.mxu0 0
    %162 = vmatpush.bf16.xpose.msra.mxu0 0
    %163 = vmatpush.bf16.xpose.msra.mxu0 0
    %164 = vmatpush.bf16.xpose.msra.mxu0 %v155
    %165 = vmatmul.bf16.gmra.mxu0 %v152
    %v166 = vpop.f32.mrf.mxu0
    %v167 = vadd.f32 0.0, %v166
    %v168 = vpop.f32.mrf.mxu0
    %169 = vdwg.mxu0
    %v170 = vsel %vm120, -inf, %v143
    %v171 = vsel %vm120, -inf, %v167
    %v172 = vsel %vm126, %v170, -inf
    %v173 = vrot.slane %v172, 4
    %v174 = vmax.f32 %v172, %v173
    %v175 = vrot.slane %v174, 2
    %v176 = vmax.f32 %v174, %v175
    %v177 = vrot.slane %v176, 1
    %v178 = vmax.f32 %v176, %v177
    %v179 = vsel %vm126, %v171, -inf
    %v180 = vrot.slane %v179, 4
    %v181 = vmax.f32 %v179, %v180
    %v182 = vrot.slane %v181, 2
    %v183 = vmax.f32 %v181, %v182
    %v184 = vrot.slane %v183, 1
    %v185 = vmax.f32 %v183, %v184
    %v186 = vsub.f32 %v170, %v178
    %v187 = vsub.f32 %v171, %v185
    %v188 = vmul.f32 %v186, 1.442695
    %v189 = vpow.pop %v188
    %v190 = vmul.f32 %v187, 1.442695
    %v191 = vpow.pop %v190
    %v192 = vsel %vm126, %v189, 0.0
    %v193 = vrot.slane %v192, 4
    %v194 = vadd.f32 %v192, %v193
    %v195 = vrot.slane %v194, 2
    %v196 = vadd.f32 %v194, %v195
    %v197 = vrot.slane %v196, 1
    %v198 = vadd.f32 %v196, %v197
    %v199 = vsel %vm126, %v191, 0.0
    %v200 = vrot.slane %v199, 4
    %v201 = vadd.f32 %v199, %v200
    %v202 = vrot.slane %v201, 2
    %v203 = vadd.f32 %v201, %v202
    %v204 = vrot.slane %v203, 1
    %v205 = vadd.f32 %v203, %v204
    %v206 = vrcp.pop %v198
    %v207 = vrcp.pop %v205
    %v208 = vmul.f32 %v189, %v206
    %v209 = vmul.f32 %v191, %v207
    %v210 = vpack.c.bf16 %v208, %v208
    %v211 = vpack.c.bf16 %v209, %v209
    %212 = vrot.lane.b32.xlu0 %v123, 64
    %v213 = vpop.permute.xlu0 %212
    %v215 = vsel %vm126, %v210, 0
    %vm217 = vcmask 1043456
    %v219 = vsel %vm217, %v213, 0
    %221 = vmatpush.bf16.msra.mxu0 0
    %222 = vmatpush.bf16.msra.mxu0 0
    %223 = vmatpush.bf16.msra.mxu0 0
    %224 = vmatpush.bf16.msra.mxu0 0
    %225 = vmatpush.bf16.msra.mxu0 0
    %226 = vmatpush.bf16.msra.mxu0 0
    %227 = vmatpush.bf16.msra.mxu0 0
    %228 = vmatpush.bf16.msra.mxu0 %v219
    %229 = vmatmul.bf16.gmra.mxu0 %v215
    %v230 = vpop.f32.mrf.mxu0
    %v231 = vadd.f32 0.0, %v230
    %v232 = vpop.f32.mrf.mxu0
    %233 = vdwg.mxu0
    %234 = vrot.lane.b32.xlu0 %v148, 64
    %v235 = vpop.permute.xlu0 %234
    %v237 = vsel %vm126, %v211, 0
    %v240 = vsel %vm217, %v235, 0
    %242 = vmatpush.bf16.msra.mxu0 0
    %243 = vmatpush.bf16.msra.mxu0 0
    %244 = vmatpush.bf16.msra.mxu0 0
    %245 = vmatpush.bf16.msra.mxu0 0
    %246 = vmatpush.bf16.msra.mxu0 0
    %247 = vmatpush.bf16.msra.mxu0 0
    %248 = vmatpush.bf16.msra.mxu0 0
    %249 = vmatpush.bf16.msra.mxu0 %v240
    %250 = vmatmul.bf16.gmra.mxu0 %v237
    %v251 = vpop.f32.mrf.mxu0
    %v252 = vadd.f32 0.0, %v251
    %v253 = vpop.f32.mrf.mxu0
    %254 = vdwg.mxu0
    %v255 = vpack.c.bf16 %v231, %v231
    %v256 = vpack.c.bf16 %v252, %v252
    %vm257 = vcmask 60416
    %258 = vst.msk [vmem:[#allocation2] sm:$0xf] %vm257, %v255
    %259 = vst.msk [vmem:[#allocation2 + $0x4] sm:$0xf] %vm257, %v256
    %260 = vrot.lane.b32.xlu0 %v123, 120
    %v261 = vpop.permute.xlu0 %260
    %262 = vrot.lane.b32.xlu0 %v123, 88
    %v263 = vpop.permute.xlu0 %262
    %v265 = vsel %vm126, %v261, 0
    %v268 = vsel %vm126, %v263, 0
    %270 = vmatpush.bf16.xpose.msra.mxu0 0
    %271 = vmatpush.bf16.xpose.msra.mxu0 0
    %272 = vmatpush.bf16.xpose.msra.mxu0 0
    %273 = vmatpush.bf16.xpose.msra.mxu0 0
    %274 = vmatpush.bf16.xpose.msra.mxu0 0
    %275 = vmatpush.bf16.xpose.msra.mxu0 0
    %276 = vmatpush.bf16.xpose.msra.mxu0 0
    %277 = vmatpush.bf16.xpose.msra.mxu0 %v268
    %278 = vmatmul.bf16.gmra.mxu0 %v265
    %v279 = vpop.f32.mrf.mxu0
    %v280 = vadd.f32 0.0, %v279
    %v281 = vpop.f32.mrf.mxu0
    %282 = vdwg.mxu0
    %283 = vrot.lane.b32.xlu0 %v148, 120
    %v284 = vpop.permute.xlu0 %283
    %285 = vrot.lane.b32.xlu0 %v148, 88
    %v286 = vpop.permute.xlu0 %285
    %v288 = vsel %vm126, %v284, 0
    %v291 = vsel %vm126, %v286, 0
    %293 = vmatpush.bf16.xpose.msra.mxu0 0
    %294 = vmatpush.bf16.xpose.msra.mxu0 0
    %295 = vmatpush.bf16.xpose.msra.mxu0 0
    %296 = vmatpush.bf16.xpose.msra.mxu0 0
    %297 = vmatpush.bf16.xpose.msra.mxu0 0
    %298 = vmatpush.bf16.xpose.msra.mxu0 0
    %299 = vmatpush.bf16.xpose.msra.mxu0 0
    %300 = vmatpush.bf16.xpose.msra.mxu0 %v291
    %301 = vmatmul.bf16.gmra.mxu0 %v288
    %v302 = vpop.f32.mrf.mxu0
    %v303 = vadd.f32 0.0, %v302
    %v304 = vpop.f32.mrf.mxu0
    %305 = vdwg.mxu0
    %v306 = vsel %vm120, -inf, %v280
    %v307 = vsel %vm120, -inf, %v303
    %v308 = vsel %vm126, %v306, -inf
    %v309 = vrot.slane %v308, 4
    %v310 = vmax.f32 %v308, %v309
    %v311 = vrot.slane %v310, 2
    %v312 = vmax.f32 %v310, %v311
    %v313 = vrot.slane %v312, 1
    %v314 = vmax.f32 %v312, %v313
    %v315 = vsel %vm126, %v307, -inf
    %v316 = vrot.slane %v315, 4
    %v317 = vmax.f32 %v315, %v316
    %v318 = vrot.slane %v317, 2
    %v319 = vmax.f32 %v317, %v318
    %v320 = vrot.slane %v319, 1
    %v321 = vmax.f32 %v319, %v320
    %v322 = vsub.f32 %v306, %v314
    %v323 = vsub.f32 %v307, %v321
    %v324 = vmul.f32 %v322, 1.442695
    %v325 = vpow.pop %v324
    %v326 = vmul.f32 %v323, 1.442695
    %v327 = vpow.pop %v326
    %v328 = vsel %vm126, %v325, 0.0
    %v329 = vrot.slane %v328, 4
    %v330 = vadd.f32 %v328, %v329
    %v331 = vrot.slane %v330, 2
    %v332 = vadd.f32 %v330, %v331
    %v333 = vrot.slane %v332, 1
    %v334 = vadd.f32 %v332, %v333
    %v335 = vsel %vm126, %v327, 0.0
    %v336 = vrot.slane %v335, 4
    %v337 = vadd.f32 %v335, %v336
    %v338 = vrot.slane %v337, 2
    %v339 = vadd.f32 %v337, %v338
    %v340 = vrot.slane %v339, 1
    %v341 = vadd.f32 %v339, %v340
    %v342 = vrcp.pop %v334
    %v343 = vrcp.pop %v341
    %v344 = vmul.f32 %v325, %v342
    %v345 = vmul.f32 %v327, %v343
    %v346 = vpack.c.bf16 %v344, %v344
    %v347 = vpack.c.bf16 %v345, %v345
    %348 = vrot.lane.b32.xlu0 %v123, 56
    %v349 = vpop.permute.xlu0 %348
    %v351 = vsel %vm126, %v346, 0
    %v354 = vsel %vm217, %v349, 0
    %356 = vmatpush.bf16.msra.mxu0 0
    %357 = vmatpush.bf16.msra.mxu0 0
    %358 = vmatpush.bf16.msra.mxu0 0
    %359 = vmatpush.bf16.msra.mxu0 0
    %360 = vmatpush.bf16.msra.mxu0 0
    %361 = vmatpush.bf16.msra.mxu0 0
    %362 = vmatpush.bf16.msra.mxu0 0
    %363 = vmatpush.bf16.msra.mxu0 %v354
    %364 = vmatmul.bf16.gmra.mxu0 %v351
    %v365 = vpop.f32.mrf.mxu0
    %v366 = vadd.f32 0.0, %v365
    %v367 = vpop.f32.mrf.mxu0
    %368 = vdwg.mxu0
    %369 = vrot.lane.b32.xlu0 %v148, 56
    %v370 = vpop.permute.xlu0 %369
    %v372 = vsel %vm126, %v347, 0
    %v375 = vsel %vm217, %v370, 0
    %377 = vmatpush.bf16.msra.mxu0 0
    %378 = vmatpush.bf16.msra.mxu0 0
    %379 = vmatpush.bf16.msra.mxu0 0
    %380 = vmatpush.bf16.msra.mxu0 0
    %381 = vmatpush.bf16.msra.mxu0 0
    %382 = vmatpush.bf16.msra.mxu0 0
    %383 = vmatpush.bf16.msra.mxu0 0
    %384 = vmatpush.bf16.msra.mxu0 %v375
    %385 = vmatmul.bf16.gmra.mxu0 %v372
    %v386 = vpop.f32.mrf.mxu0
    %v387 = vadd.f32 0.0, %v386
    %v388 = vpop.f32.mrf.mxu0
    %389 = vdwg.mxu0
    %v390 = vpack.c.bf16 %v366, %v366
    %v391 = vpack.c.bf16 %v387, %v387
    %394 = vrot.lane.b32.xlu0 %v390, 8
    %v395 = vpop.permute.xlu0 %394
    %396 = vrot.lane.b32.xlu0 %v391, 8
    %v397 = vpop.permute.xlu0 %396
    %vm400 = vcmask 126016
    %401 = vst.msk [vmem:[#allocation2] sm:$0xf] %vm400, %v395
    %402 = vst.msk [vmem:[#allocation2 + $0x4] sm:$0xf] %vm400, %v397
    %403 = vrot.lane.b32.xlu0 %v123, 112
    %v404 = vpop.permute.xlu0 %403
    %405 = vrot.lane.b32.xlu0 %v123, 80
    %v406 = vpop.permute.xlu0 %405
    %v408 = vsel %vm126, %v404, 0
    %v411 = vsel %vm126, %v406, 0
    %413 = vmatpush.bf16.xpose.msra.mxu0 0
    %414 = vmatpush.bf16.xpose.msra.mxu0 0
    %415 = vmatpush.bf16.xpose.msra.mxu0 0
    %416 = vmatpush.bf16.xpose.msra.mxu0 0
    %417 = vmatpush.bf16.xpose.msra.mxu0 0
    %418 = vmatpush.bf16.xpose.msra.mxu0 0
    %419 = vmatpush.bf16.xpose.msra.mxu0 0
    %420 = vmatpush.bf16.xpose.msra.mxu0 %v411
    %421 = vmatmul.bf16.gmra.mxu0 %v408
    %v422 = vpop.f32.mrf.mxu0
    %v423 = vadd.f32 0.0, %v422
    %v424 = vpop.f32.mrf.mxu0
    %425 = vdwg.mxu0
    %426 = vrot.lane.b32.xlu0 %v148, 112
    %v427 = vpop.permute.xlu0 %426
    %428 = vrot.lane.b32.xlu0 %v148, 80
    %v429 = vpop.permute.xlu0 %428
    %v431 = vsel %vm126, %v427, 0
    %v434 = vsel %vm126, %v429, 0
    %436 = vmatpush.bf16.xpose.msra.mxu0 0
    %437 = vmatpush.bf16.xpose.msra.mxu0 0
    %438 = vmatpush.bf16.xpose.msra.mxu0 0
    %439 = vmatpush.bf16.xpose.msra.mxu0 0
    %440 = vmatpush.bf16.xpose.msra.mxu0 0
    %441 = vmatpush.bf16.xpose.msra.mxu0 0
    %442 = vmatpush.bf16.xpose.msra.mxu0 0
    %443 = vmatpush.bf16.xpose.msra.mxu0 %v434
    %444 = vmatmul.bf16.gmra.mxu0 %v431
    %v445 = vpop.f32.mrf.mxu0
    %v446 = vadd.f32 0.0, %v445
    %v447 = vpop.f32.mrf.mxu0
    %448 = vdwg.mxu0
    %v449 = vsel %vm120, -inf, %v423
    %v450 = vsel %vm120, -inf, %v446
    %v451 = vsel %vm126, %v449, -inf
    %v452 = vrot.slane %v451, 4
    %v453 = vmax.f32 %v451, %v452
    %v454 = vrot.slane %v453, 2
    %v455 = vmax.f32 %v453, %v454
    %v456 = vrot.slane %v455, 1
    %v457 = vmax.f32 %v455, %v456
    %v458 = vsel %vm126, %v450, -inf
    %v459 = vrot.slane %v458, 4
    %v460 = vmax.f32 %v458, %v459
    %v461 = vrot.slane %v460, 2
    %v462 = vmax.f32 %v460, %v461
    %v463 = vrot.slane %v462, 1
    %v464 = vmax.f32 %v462, %v463
    %v465 = vsub.f32 %v449, %v457
    %v466 = vsub.f32 %v450, %v464
    %v467 = vmul.f32 %v465, 1.442695
    %v468 = vpow.pop %v467
    %v469 = vmul.f32 %v466, 1.442695
    %v470 = vpow.pop %v469
    %v471 = vsel %vm126, %v468, 0.0
    %v472 = vrot.slane %v471, 4
    %v473 = vadd.f32 %v471, %v472
    %v474 = vrot.slane %v473, 2
    %v475 = vadd.f32 %v473, %v474
    %v476 = vrot.slane %v475, 1
    %v477 = vadd.f32 %v475, %v476
    %v478 = vsel %vm126, %v470, 0.0
    %v479 = vrot.slane %v478, 4
    %v480 = vadd.f32 %v478, %v479
    %v481 = vrot.slane %v480, 2
    %v482 = vadd.f32 %v480, %v481
    %v483 = vrot.slane %v482, 1
    %v484 = vadd.f32 %v482, %v483
    %v485 = vrcp.pop %v477
    %v486 = vrcp.pop %v484
    %v487 = vmul.f32 %v468, %v485
    %v488 = vmul.f32 %v470, %v486
    %v489 = vpack.c.bf16 %v487, %v487
    %v490 = vpack.c.bf16 %v488, %v488
    %491 = vrot.lane.b32.xlu0 %v123, 48
    %v492 = vpop.permute.xlu0 %491
    %v494 = vsel %vm126, %v489, 0
    %v497 = vsel %vm217, %v492, 0
    %499 = vmatpush.bf16.msra.mxu0 0
    %500 = vmatpush.bf16.msra.mxu0 0
    %501 = vmatpush.bf16.msra.mxu0 0
    %502 = vmatpush.bf16.msra.mxu0 0
    %503 = vmatpush.bf16.msra.mxu0 0
    %504 = vmatpush.bf16.msra.mxu0 0
    %505 = vmatpush.bf16.msra.mxu0 0
    %506 = vmatpush.bf16.msra.mxu0 %v497
    %507 = vmatmul.bf16.gmra.mxu0 %v494
    %v508 = vpop.f32.mrf.mxu0
    %v509 = vadd.f32 0.0, %v508
    %v510 = vpop.f32.mrf.mxu0
    %511 = vdwg.mxu0
    %512 = vrot.lane.b32.xlu0 %v148, 48
    %v513 = vpop.permute.xlu0 %512
    %v515 = vsel %vm126, %v490, 0
    %v518 = vsel %vm217, %v513, 0
    %520 = vmatpush.bf16.msra.mxu0 0
    %521 = vmatpush.bf16.msra.mxu0 0
    %522 = vmatpush.bf16.msra.mxu0 0
    %523 = vmatpush.bf16.msra.mxu0 0
    %524 = vmatpush.bf16.msra.mxu0 0
    %525 = vmatpush.bf16.msra.mxu0 0
    %526 = vmatpush.bf16.msra.mxu0 0
    %527 = vmatpush.bf16.msra.mxu0 %v518
    %528 = vmatmul.bf16.gmra.mxu0 %v515
    %v529 = vpop.f32.mrf.mxu0
    %v530 = vadd.f32 0.0, %v529
    %v531 = vpop.f32.mrf.mxu0
    %532 = vdwg.mxu0
    %v533 = vpack.c.bf16 %v509, %v509
    %v534 = vpack.c.bf16 %v530, %v530
    %537 = vrot.lane.b32.xlu0 %v533, 16
    %v538 = vpop.permute.xlu0 %537
    %539 = vrot.lane.b32.xlu0 %v534, 16
    %v540 = vpop.permute.xlu0 %539
    %vm543 = vcmask 191616
    %544 = vst.msk [vmem:[#allocation2] sm:$0xf] %vm543, %v538
    %545 = vst.msk [vmem:[#allocation2 + $0x4] sm:$0xf] %vm543, %v540
    %546 = vrot.lane.b32.xlu0 %v123, 104
    %v547 = vpop.permute.xlu0 %546
    %548 = vrot.lane.b32.xlu0 %v123, 72
    %v549 = vpop.permute.xlu0 %548
    %v551 = vsel %vm126, %v547, 0
    %v554 = vsel %vm126, %v549, 0
    %556 = vmatpush.bf16.xpose.msra.mxu0 0
    %557 = vmatpush.bf16.xpose.msra.mxu0 0
    %558 = vmatpush.bf16.xpose.msra.mxu0 0
    %559 = vmatpush.bf16.xpose.msra.mxu0 0
    %560 = vmatpush.bf16.xpose.msra.mxu0 0
    %561 = vmatpush.bf16.xpose.msra.mxu0 0
    %562 = vmatpush.bf16.xpose.msra.mxu0 0
    %563 = vmatpush.bf16.xpose.msra.mxu0 %v554
    %564 = vmatmul.bf16.gmra.mxu0 %v551
    %v565 = vpop.f32.mrf.mxu0
    %v566 = vadd.f32 0.0, %v565
    %v567 = vpop.f32.mrf.mxu0
    %568 = vdwg.mxu0
    %569 = vrot.lane.b32.xlu0 %v148, 104
    %v570 = vpop.permute.xlu0 %569
    %571 = vrot.lane.b32.xlu0 %v148, 72
    %v572 = vpop.permute.xlu0 %571
    %v574 = vsel %vm126, %v570, 0
    %v577 = vsel %vm126, %v572, 0
    %579 = vmatpush.bf16.xpose.msra.mxu0 0
    %580 = vmatpush.bf16.xpose.msra.mxu0 0
    %581 = vmatpush.bf16.xpose.msra.mxu0 0
    %582 = vmatpush.bf16.xpose.msra.mxu0 0
    %583 = vmatpush.bf16.xpose.msra.mxu0 0
    %584 = vmatpush.bf16.xpose.msra.mxu0 0
    %585 = vmatpush.bf16.xpose.msra.mxu0 0
    %586 = vmatpush.bf16.xpose.msra.mxu0 %v577
    %587 = vmatmul.bf16.gmra.mxu0 %v574
    %v588 = vpop.f32.mrf.mxu0
    %v589 = vadd.f32 0.0, %v588
    %v590 = vpop.f32.mrf.mxu0
    %591 = vdwg.mxu0
    %v592 = vsel %vm120, -inf, %v566
    %v593 = vsel %vm120, -inf, %v589
    %v594 = vsel %vm126, %v592, -inf
    %v595 = vrot.slane %v594, 4
    %v596 = vmax.f32 %v594, %v595
    %v597 = vrot.slane %v596, 2
    %v598 = vmax.f32 %v596, %v597
    %v599 = vrot.slane %v598, 1
    %v600 = vmax.f32 %v598, %v599
    %v601 = vsel %vm126, %v593, -inf
    %v602 = vrot.slane %v601, 4
    %v603 = vmax.f32 %v601, %v602
    %v604 = vrot.slane %v603, 2
    %v605 = vmax.f32 %v603, %v604
    %v606 = vrot.slane %v605, 1
    %v607 = vmax.f32 %v605, %v606
    %v608 = vsub.f32 %v592, %v600
    %v609 = vsub.f32 %v593, %v607
    %v610 = vmul.f32 %v608, 1.442695
    %v611 = vpow.pop %v610
    %v612 = vmul.f32 %v609, 1.442695
    %v613 = vpow.pop %v612
    %v614 = vsel %vm126, %v611, 0.0
    %v615 = vrot.slane %v614, 4
    %v616 = vadd.f32 %v614, %v615
    %v617 = vrot.slane %v616, 2
    %v618 = vadd.f32 %v616, %v617
    %v619 = vrot.slane %v618, 1
    %v620 = vadd.f32 %v618, %v619
    %v621 = vsel %vm126, %v613, 0.0
    %v622 = vrot.slane %v621, 4
    %v623 = vadd.f32 %v621, %v622
    %v624 = vrot.slane %v623, 2
    %v625 = vadd.f32 %v623, %v624
    %v626 = vrot.slane %v625, 1
    %v627 = vadd.f32 %v625, %v626
    %v628 = vrcp.pop %v620
    %v629 = vrcp.pop %v627
    %v630 = vmul.f32 %v611, %v628
    %v631 = vmul.f32 %v613, %v629
    %v632 = vpack.c.bf16 %v630, %v630
    %v633 = vpack.c.bf16 %v631, %v631
    %634 = vrot.lane.b32.xlu0 %v123, 40
    %v635 = vpop.permute.xlu0 %634
    %v637 = vsel %vm126, %v632, 0
    %v640 = vsel %vm217, %v635, 0
    %642 = vmatpush.bf16.msra.mxu0 0
    %643 = vmatpush.bf16.msra.mxu0 0
    %644 = vmatpush.bf16.msra.mxu0 0
    %645 = vmatpush.bf16.msra.mxu0 0
    %646 = vmatpush.bf16.msra.mxu0 0
    %647 = vmatpush.bf16.msra.mxu0 0
    %648 = vmatpush.bf16.msra.mxu0 0
    %649 = vmatpush.bf16.msra.mxu0 %v640
    %650 = vmatmul.bf16.gmra.mxu0 %v637
    %v651 = vpop.f32.mrf.mxu0
    %v652 = vadd.f32 0.0, %v651
    %v653 = vpop.f32.mrf.mxu0
    %654 = vdwg.mxu0
    %655 = vrot.lane.b32.xlu0 %v148, 40
    %v656 = vpop.permute.xlu0 %655
    %v658 = vsel %vm126, %v633, 0
    %v661 = vsel %vm217, %v656, 0
    %663 = vmatpush.bf16.msra.mxu0 0
    %664 = vmatpush.bf16.msra.mxu0 0
    %665 = vmatpush.bf16.msra.mxu0 0
    %666 = vmatpush.bf16.msra.mxu0 0
    %667 = vmatpush.bf16.msra.mxu0 0
    %668 = vmatpush.bf16.msra.mxu0 0
    %669 = vmatpush.bf16.msra.mxu0 0
    %670 = vmatpush.bf16.msra.mxu0 %v661
    %671 = vmatmul.bf16.gmra.mxu0 %v658
    %v672 = vpop.f32.mrf.mxu0
    %v673 = vadd.f32 0.0, %v672
    %v674 = vpop.f32.mrf.mxu0
    %675 = vdwg.mxu0
    %v676 = vpack.c.bf16 %v652, %v652
    %v677 = vpack.c.bf16 %v673, %v673
    %680 = vrot.lane.b32.xlu0 %v676, 24
    %v681 = vpop.permute.xlu0 %680
    %682 = vrot.lane.b32.xlu0 %v677, 24
    %v683 = vpop.permute.xlu0 %682
    %vm686 = vcmask 257216
    %687 = vst.msk [vmem:[#allocation2] sm:$0xf] %vm686, %v681
    %688 = vst.msk [vmem:[#allocation2 + $0x4] sm:$0xf] %vm686, %v683
    %v689 = vld [vmem:[#allocation2] sm:$0xf]
    %v690 = vld [vmem:[#allocation2 + $0x4] sm:$0xf]
    %v691 = vld [vmem:[#allocation8] sm:$0xf]
    %v692 = vld [vmem:[#allocation8 + $0x4] sm:$0xf]
    %v693 = vld [vmem:[#allocation8 + $0x8] sm:$0xf]
    %v694 = vld [vmem:[#allocation8 + $0xc] sm:$0xf]
    %v695 = vld [vmem:[%s4] sm:$0x1]
    %v697 = vperm.slane %v695, 0
    %v701 = vunpack.c.l.b16 %v689
    %v702 = vunpack.c.l.b16 %v690
    %v703 = vpack.c.b16 %v702, %v701
    %v708 = vunpack.c.l.b16 %v691
    %v709 = vunpack.c.l.b16 %v692
    %v710 = vunpack.c.l.b16 %v693
    %v711 = vunpack.c.l.b16 %v694
    %v712 = vpack.c.b16 %v709, %v708
    %v713 = vpack.c.b16 %v711, %v710
    %v717 = vsel %vm96, %v703, 0
    %719 = vmatpush.bf16.msra.mxu0 0
    %720 = vmatpush.bf16.msra.mxu0 0
    %721 = vmatpush.bf16.msra.mxu0 0
    %722 = vmatpush.bf16.msra.mxu0 0
    %723 = vmatpush.bf16.msra.mxu0 0
    %724 = vmatpush.bf16.msra.mxu0 0
    %725 = vmatpush.bf16.msra.mxu0 %v713
    %726 = vmatpush.bf16.msra.mxu0 %v712
    %727 = vmatmul.bf16.gmra.mxu0 %v717
    %v728 = vpop.f32.mrf.mxu0
    %v729 = vadd.f32 %v697, %v728
    %v730 = vpop.f32.mrf.mxu0
    %v731 = vadd.f32 %v697, %v730
    %732 = vdwg.mxu0
    %733 = vst.msk [vmem:[#allocation9] sm:$0xff] %vm96, %v729
    %734 = vst.msk [vmem:[#allocation9 + $0x8] sm:$0xff] %vm96, %v731
    // Predicated region
    $region34: #{tpu_custom_call.1} parent=1 // pred_check
      _
    $region35: #{tpu_custom_call.1} parent=1 // pred_check_branch
      %736 = sbr.rel (0) target = $region37
    $region36: #{tpu_custom_call.1} parent=1 // pred_region
      %738 = vsyncadd [#allocation5], 0
      %s739 = sshll.u32 [#allocation9], 4
      %s740 = int_to_ptr.vmem [resolvable:$true] %s739
      %s741 = sshll.u32 %s5, 4
      %s742 = int_to_ptr.hbm [resolvable:$true] %s741
      %747 = dma.vmem_to_hbm [thread:$0]  %s740, 256, %s742, [#allocation5], 128, 128, 8
    $region37: #{tpu_custom_call.1} parent=1 // pred_fallthru
      _
    // Predicated region
    $region38: #{tpu_custom_call.1} parent=1 // pred_check
      _
    $region39: #{tpu_custom_call.1} parent=1 // pred_check_branch
      %749 = sbr.rel (0) target = $region41
    $region40: #{tpu_custom_call.1} parent=1 // pred_region
      %751 = dma.done [#allocation5], 256
    $region41: #{tpu_custom_call.1} parent=1 // pred_fallthru
      _
    %752 = vsyncpa [#allocation4], 1
    %753 = vsyncpa [#allocation7], 1
    %754 = vsyncpa [#allocation5], 1

</llo_original>
